<compile_context>
chip_gen: v7x
topology: tpu7x:2x2x1
jax: 0.10.0
libtpu: 0.0.40
codegen_flags: <defaults>
</compile_context>

<pallas_src>
import jax
import jax.numpy as jnp
from jax.experimental import pallas as pl
from jax.experimental.pallas import tpu as pltpu


def _round_up(n, m):
    return ((n + m - 1) // m) * m


def _policy_mlp_kernel(x_ref, w1_ref, b1_ref, w2_ref, b2_ref, w3_ref, b3_ref, o_ref):
    # x_ref: [TB, F] f32; w*: bf16; b*: [1, out] f32; o_ref: [TB, A] f32
    x = x_ref[...].astype(jnp.bfloat16)  # in-kernel cast: VPU work hidden under MXU

    # fc1 + ReLU (bf16 MXU operands, f32 accumulation; bias/ReLU in f32)
    h1 = jnp.dot(x, w1_ref[...], preferred_element_type=jnp.float32) + b1_ref[...]
    h1 = jnp.maximum(h1, 0.0).astype(jnp.bfloat16)

    # fc2 + ReLU
    h2 = jnp.dot(h1, w2_ref[...], preferred_element_type=jnp.float32) + b2_ref[...]
    h2 = jnp.maximum(h2, 0.0).astype(jnp.bfloat16)

    # fc3 (logits, f32)
    logits = jnp.dot(h2, w3_ref[...], preferred_element_type=jnp.float32) + b3_ref[...]

    # stable softmax over dim=1 (actions) — exact divide so rows sum to 1
    m = jnp.max(logits, axis=1, keepdims=True)
    e = jnp.exp(logits - m)
    o_ref[...] = e / jnp.sum(e, axis=1, keepdims=True)


def prepare_kernel_params(params):
    """One-time prep of kernel operands: bf16 matmul weights, f32 biases.

    Call once (outside the training loop); the forward never re-casts weights.
    """
    return {
        "w1": params["w1"].astype(jnp.bfloat16),
        "w2": params["w2"].astype(jnp.bfloat16),
        "w3": params["w3"].astype(jnp.bfloat16),
        "b1": params["b1"].astype(jnp.float32),
        "b2": params["b2"].astype(jnp.float32),
        "b3": params["b3"].astype(jnp.float32),
    }


def policy_network_forward(x, kparams, *, block_b=512):
    """x: [B, F] float32. kparams: output of prepare_kernel_params()."""
    w1, b1 = kparams["w1"], kparams["b1"]
    w2, b2 = kparams["w2"], kparams["b2"]
    w3, b3 = kparams["w3"], kparams["b3"]
    B, F = x.shape
    H1, H2, A = w1.shape[1], w2.shape[1], w3.shape[1]

    # Batch tile: multiple of 16 (bf16 sublane packing). Big enough to fill the
    # 256-wide MXU and amortize grid-step overhead, but keep >= 2 tiles when B
    # allows so both v7x TensorCores get work along the "parallel" batch axis.
    tb = min(block_b, _round_up(B, 16))
    if pl.cdiv(B, tb) == 1 and B >= 32:
        tb = _round_up(pl.cdiv(B, 2), 16)
    grid_b = pl.cdiv(B, tb)  # ragged last block: OOB rows masked on store

    # Advisory cost estimate for the XLA scheduler.
    flops = 2 * B * (F * H1 + H1 * H2 + H2 * A)
    bytes_accessed = (
        x.size * 4
        + (w1.size + w2.size + w3.size) * 2
        + (b1.size + b2.size + b3.size) * 4
        + B * A * 4
    )
    cost = pl.CostEstimate(flops=flops, transcendentals=B * A, bytes_accessed=bytes_accessed)

    def const_spec(shape):
        # Same block index every grid step -> stays VMEM-resident, no re-DMA.
        return pl.BlockSpec(shape, lambda i: (0, 0))

    return pl.pallas_call(
        _policy_mlp_kernel,
        out_shape=jax.ShapeDtypeStruct((B, A), jnp.float32),
        grid=(grid_b,),
        in_specs=[
            pl.BlockSpec((tb, F), lambda i: (i, 0)),  # x: batch-tiled, f32 (cast in-kernel)
            const_spec(w1.shape), const_spec(b1.shape),
            const_spec(w2.shape), const_spec(b2.shape),
            const_spec(w3.shape), const_spec(b3.shape),
        ],
        out_specs=pl.BlockSpec((tb, A), lambda i: (i, 0)),
        compiler_params=pltpu.CompilerParams(
            dimension_semantics=("parallel",),  # independent batch tiles
        ),
        cost_estimate=cost,
    )(x, w1, b1, w2, b2, w3, b3)


def init_params(key, in_features, hidden1, hidden2, A):
    """Deterministic synthetic init (uniform, roughly like PyTorch's Linear default)."""
    ks = jax.random.split(key, 6)

    def lin(kw, kb, fan_in, fan_out):
        bound = 1.0 / jnp.sqrt(fan_in)
        w = jax.random.uniform(kw, (fan_in, fan_out), jnp.float32, -bound, bound)
        b = jax.random.uniform(kb, (1, fan_out), jnp.float32, -bound, bound)
        return w, b

    w1, b1 = lin(ks[0], ks[1], in_features, hidden1)
    w2, b2 = lin(ks[2], ks[3], hidden1, hidden2)
    w3, b3 = lin(ks[4], ks[5], hidden2, A)
    return {"w1": w1, "b1": b1, "w2": w2, "b2": b2, "w3": w3, "b3": b3}


def _reference_forward_f32(x, p):
    h1 = jnp.maximum(x @ p["w1"] + p["b1"], 0.0)
    h2 = jnp.maximum(h1 @ p["w2"] + p["b2"], 0.0)
    logits = h2 @ p["w3"] + p["b3"]
    m = jnp.max(logits, axis=1, keepdims=True)
    e = jnp.exp(logits - m)
    return e / jnp.sum(e, axis=1, keepdims=True)


def _reference_forward_bf16(x, p):
    # Mirrors the kernel's precision choices (bf16 operands, f32 accumulation).
    xb = x.astype(jnp.bfloat16)
    w1 = p["w1"].astype(jnp.bfloat16)
    w2 = p["w2"].astype(jnp.bfloat16)
    w3 = p["w3"].astype(jnp.bfloat16)
    h1 = jnp.maximum(
        jnp.dot(xb, w1, preferred_element_type=jnp.float32) + p["b1"], 0.0
    ).astype(jnp.bfloat16)
    h2 = jnp.maximum(
        jnp.dot(h1, w2, preferred_element_type=jnp.float32) + p["b2"], 0.0
    ).astype(jnp.bfloat16)
    logits = jnp.dot(h2, w3, preferred_element_type=jnp.float32) + p["b3"]
    m = jnp.max(logits, axis=1, keepdims=True)
    e = jnp.exp(logits - m)
    return e / jnp.sum(e, axis=1, keepdims=True)


if __name__ == "__main__":
    key = jax.random.PRNGKey(0)
    k_x, k_p, k_x2 = jax.random.split(key, 3)

    F, A = 128, 8            # input features, number of actions
    H1, H2 = 512, 256        # fixed by the module definition
    B = 256                  # two batch tiles of 128 -> exercises the pipelined grid

    x = jax.random.normal(k_x, (B, F), dtype=jnp.float32)
    params = init_params(k_p, F, H1, H2, A)
    kparams = prepare_kernel_params(params)   # one-time bf16 weight cast

    out = jax.block_until_ready(policy_network_forward(x, kparams))

    ref_bf16 = _reference_forward_bf16(x, params)
    ref_f32 = _reference_forward_f32(x, params)
    assert out.shape == (B, A)
    assert jnp.allclose(out, ref_bf16, atol=5e-3, rtol=5e-3)
    assert jnp.allclose(out, ref_f32, atol=2e-2, rtol=2e-2)
    # probabilities sum to 1 along dim=1 (exact divide in the kernel)
    assert jnp.allclose(jnp.sum(out, axis=1), jnp.ones((B,)), atol=1e-3)

    # Also exercise the small / non-multiple batch path (ragged edge block).
    x2 = jax.random.normal(k_x2, (20, F), dtype=jnp.float32)
    out2 = jax.block_until_ready(policy_network_forward(x2, kparams))
    assert out2.shape == (20, A)
    assert jnp.allclose(out2, _reference_forward_bf16(x2, params), atol=5e-3, rtol=5e-3)
    assert jnp.allclose(jnp.sum(out2, axis=1), jnp.ones((20,)), atol=1e-3)

    print("KERNEL_OK")
</pallas_src>

<mosaic_0001>
module attributes {stable_mosaic.version = 11 : i64} {
  func.func @_policy_mlp_kernel(%arg0: i32, %arg1: memref<128x128xf32, #tpu.memory_space<vmem>>, %arg2: memref<128x512xbf16, #tpu.memory_space<vmem>>, %arg3: memref<1x512xf32, #tpu.memory_space<vmem>>, %arg4: memref<512x256xbf16, #tpu.memory_space<vmem>>, %arg5: memref<1x256xf32, #tpu.memory_space<vmem>>, %arg6: memref<256x8xbf16, #tpu.memory_space<vmem>>, %arg7: memref<1x8xf32, #tpu.memory_space<vmem>>, %arg8: memref<128x8xf32, #tpu.memory_space<vmem>>) attributes {dimension_semantics = [#tpu.dimension_semantics<parallel>], iteration_bounds = array<i64: 2>, scalar_prefetch = 0 : i64, scratch_operands = 0 : i64, tpu.core_type = #tpu.core_type<tc>, window_params = [{transform_indices = @transform_0, window_bounds = array<i64: 128, 128>}, {pipeline_mode = #tpu.pipeline_mode<synchronous>, transform_indices = @transform_1, window_bounds = array<i64: 128, 512>}, {pipeline_mode = #tpu.pipeline_mode<synchronous>, transform_indices = @transform_2, window_bounds = array<i64: 1, 512>}, {pipeline_mode = #tpu.pipeline_mode<synchronous>, transform_indices = @transform_3, window_bounds = array<i64: 512, 256>}, {pipeline_mode = #tpu.pipeline_mode<synchronous>, transform_indices = @transform_4, window_bounds = array<i64: 1, 256>}, {pipeline_mode = #tpu.pipeline_mode<synchronous>, transform_indices = @transform_5, window_bounds = array<i64: 256, 8>}, {pipeline_mode = #tpu.pipeline_mode<synchronous>, transform_indices = @transform_6, window_bounds = array<i64: 1, 8>}, {transform_indices = @transform_7, window_bounds = array<i64: 128, 8>}]} {
    %c0 = arith.constant 0 : index
    %c0_0 = arith.constant 0 : index
    %0 = vector.load %arg1[%c0, %c0_0] : memref<128x128xf32, #tpu.memory_space<vmem>>, vector<128x128xf32>
    %1 = arith.truncf %0 : vector<128x128xf32> to vector<128x128xbf16>
    %c0_1 = arith.constant 0 : index
    %c0_2 = arith.constant 0 : index
    %2 = vector.load %arg2[%c0_1, %c0_2] : memref<128x512xbf16, #tpu.memory_space<vmem>>, vector<128x512xbf16>
    %cst = arith.constant dense<0.000000e+00> : vector<128x512xf32>
    %3 = tpu.matmul %1, %2, %cst {dimension_numbers = #tpu.dot_dimension_numbers<[1], [0], [0], [1], [0, 0, 1, 1], [], []>} : vector<128x128xbf16>, vector<128x512xbf16>, vector<128x512xf32> -> vector<128x512xf32>
    %c0_3 = arith.constant 0 : index
    %c0_4 = arith.constant 0 : index
    %4 = vector.load %arg3[%c0_3, %c0_4] : memref<1x512xf32, #tpu.memory_space<vmem>>, vector<1x512xf32>
    %5 = vector.broadcast %4 : vector<1x512xf32> to vector<128x512xf32>
    %6 = arith.addf %3, %5 : vector<128x512xf32>
    %cst_5 = arith.constant 0.000000e+00 : f32
    %7 = vector.broadcast %cst_5 : f32 to vector<128x512xf32>
    %8 = arith.maximumf %6, %7 : vector<128x512xf32>
    %9 = arith.truncf %8 : vector<128x512xf32> to vector<128x512xbf16>
    %c0_6 = arith.constant 0 : index
    %c0_7 = arith.constant 0 : index
    %10 = vector.load %arg4[%c0_6, %c0_7] : memref<512x256xbf16, #tpu.memory_space<vmem>>, vector<512x256xbf16>
    %cst_8 = arith.constant dense<0.000000e+00> : vector<128x256xf32>
    %11 = tpu.matmul %9, %10, %cst_8 {dimension_numbers = #tpu.dot_dimension_numbers<[1], [0], [0], [1], [0, 0, 1, 1], [], []>} : vector<128x512xbf16>, vector<512x256xbf16>, vector<128x256xf32> -> vector<128x256xf32>
    %c0_9 = arith.constant 0 : index
    %c0_10 = arith.constant 0 : index
    %12 = vector.load %arg5[%c0_9, %c0_10] : memref<1x256xf32, #tpu.memory_space<vmem>>, vector<1x256xf32>
    %13 = vector.broadcast %12 : vector<1x256xf32> to vector<128x256xf32>
    %14 = arith.addf %11, %13 : vector<128x256xf32>
    %cst_11 = arith.constant 0.000000e+00 : f32
    %15 = vector.broadcast %cst_11 : f32 to vector<128x256xf32>
    %16 = arith.maximumf %14, %15 : vector<128x256xf32>
    %17 = arith.truncf %16 : vector<128x256xf32> to vector<128x256xbf16>
    %c0_12 = arith.constant 0 : index
    %c0_13 = arith.constant 0 : index
    %18 = vector.load %arg6[%c0_12, %c0_13] : memref<256x8xbf16, #tpu.memory_space<vmem>>, vector<256x8xbf16>
    %cst_14 = arith.constant dense<0.000000e+00> : vector<128x8xf32>
    %19 = tpu.matmul %17, %18, %cst_14 {dimension_numbers = #tpu.dot_dimension_numbers<[1], [0], [0], [1], [0, 0, 1, 1], [], []>} : vector<128x256xbf16>, vector<256x8xbf16>, vector<128x8xf32> -> vector<128x8xf32>
    %c0_15 = arith.constant 0 : index
    %c0_16 = arith.constant 0 : index
    %20 = vector.load %arg7[%c0_15, %c0_16] : memref<1x8xf32, #tpu.memory_space<vmem>>, vector<1x8xf32>
    %21 = vector.broadcast %20 : vector<1x8xf32> to vector<128x8xf32>
    %22 = arith.addf %19, %21 : vector<128x8xf32>
    %cst_17 = arith.constant dense<0xFF800000> : vector<128xf32>
    %23 = vector.multi_reduction <maximumf>, %22, %cst_17 [1] : vector<128x8xf32> to vector<128xf32>
    %24 = vector.shape_cast %23 : vector<128xf32> to vector<128x1xf32>
    %25 = vector.broadcast %24 : vector<128x1xf32> to vector<128x8xf32>
    %26 = arith.subf %22, %25 : vector<128x8xf32>
    %27 = math.exp %26 : vector<128x8xf32>
    %cst_18 = arith.constant dense<0.000000e+00> : vector<128xf32>
    %28 = vector.multi_reduction <add>, %27, %cst_18 [1] : vector<128x8xf32> to vector<128xf32>
    %29 = vector.shape_cast %28 : vector<128xf32> to vector<128x1xf32>
    %30 = vector.broadcast %29 : vector<128x1xf32> to vector<128x8xf32>
    %31 = arith.divf %27, %30 : vector<128x8xf32>
    %c0_19 = arith.constant 0 : index
    %c0_20 = arith.constant 0 : index
    %32 = vector.load %arg8[%c0_19, %c0_20] : memref<128x8xf32, #tpu.memory_space<vmem>>, vector<128x8xf32>
    tpu.vector_store %arg8[%c0_19, %c0_20], %31 {strides = array<i32>} : memref<128x8xf32, #tpu.memory_space<vmem>>, vector<128x8xf32>,
    return
  }
  func.func @transform_0(%arg0: i32) -> (i32, i32) {
    %c0_i32 = arith.constant 0 : i32
    %c0_i32_0 = arith.constant 0 : i32
    return %arg0, %c0_i32 : i32, i32
  }
  func.func @transform_1(%arg0: i32) -> (i32, i32) {
    %c0_i32 = arith.constant 0 : i32
    %c0_i32_0 = arith.constant 0 : i32
    %c0_i32_1 = arith.constant 0 : i32
    return %c0_i32, %c0_i32_0 : i32, i32
  }
  func.func @transform_2(%arg0: i32) -> (i32, i32) {
    %c0_i32 = arith.constant 0 : i32
    %c0_i32_0 = arith.constant 0 : i32
    %c0_i32_1 = arith.constant 0 : i32
    return %c0_i32, %c0_i32_0 : i32, i32
  }
  func.func @transform_3(%arg0: i32) -> (i32, i32) {
    %c0_i32 = arith.constant 0 : i32
    %c0_i32_0 = arith.constant 0 : i32
    %c0_i32_1 = arith.constant 0 : i32
    return %c0_i32, %c0_i32_0 : i32, i32
  }
  func.func @transform_4(%arg0: i32) -> (i32, i32) {
    %c0_i32 = arith.constant 0 : i32
    %c0_i32_0 = arith.constant 0 : i32
    %c0_i32_1 = arith.constant 0 : i32
    return %c0_i32, %c0_i32_0 : i32, i32
  }
  func.func @transform_5(%arg0: i32) -> (i32, i32) {
    %c0_i32 = arith.constant 0 : i32
    %c0_i32_0 = arith.constant 0 : i32
    %c0_i32_1 = arith.constant 0 : i32
    return %c0_i32, %c0_i32_0 : i32, i32
  }
  func.func @transform_6(%arg0: i32) -> (i32, i32) {
    %c0_i32 = arith.constant 0 : i32
    %c0_i32_0 = arith.constant 0 : i32
    %c0_i32_1 = arith.constant 0 : i32
    return %c0_i32, %c0_i32_0 : i32, i32
  }
  func.func @transform_7(%arg0: i32) -> (i32, i32) {
    %c0_i32 = arith.constant 0 : i32
    %c0_i32_0 = arith.constant 0 : i32
    return %arg0, %c0_i32 : i32, i32
  }
}

</mosaic_0001>

<llo_original>
// kernel: tpu_custom_call.1
$region0: #{tpu_custom_call.1}
  #allocation0 [shape = 'u32[]', space=smem, size = 0x4, offset = 0x4, fixed_abs, tag = 'smem constant byte address 0x4 - core index']
  #allocation1 [shape = 'u32[144,128]{1,0:T(1,128)}', space=vmem, size = 0x12000, scoped, tag = 'internal scratch']
  %s0 = inlined_call_operand.hbm [shape: f32[256,128], index: 0, kind: input, shape index: {}]
  %s1 = inlined_call_operand.hbm [shape: bf16[128,512], index: 1, kind: input, shape index: {}]
  %s2 = inlined_call_operand.vmem [shape: f32[1,512], index: 2, kind: input, shape index: {}]
  %s3 = inlined_call_operand.hbm [shape: bf16[512,256], index: 3, kind: input, shape index: {}]
  %s4 = inlined_call_operand.vmem [shape: f32[1,256], index: 4, kind: input, shape index: {}]
  %s5 = inlined_call_operand.vmem [shape: bf16[256,8], index: 5, kind: input, shape index: {}]
  %s6 = inlined_call_operand.vmem [shape: f32[1,8], index: 6, kind: input, shape index: {}]
  %s7 = inlined_call_operand.vmem [shape: f32[256,8], index: 7, kind: output, shape index: {}]
  %s8 = sld [smem:[#allocation0]]
  $region73: #{tpu_custom_call.1} parent=0
    _
  %s10 = ssub.s32 1, %s8
  %s11 = scalar_select 0, %s10, %s8
  $region1: #{tpu_custom_call.1} parent=0
    #allocation2 [shape = 'u8[131072]{0}', space=vmem, size = 0x20000, scoped, tag = 'input window, operand 0']
    #allocation3 [shape = 's32[2]{0}', space=sflag, size = 0x8, scoped, tag = 'scoped memory for tpu_custom_call.1']
    #allocation4 [shape = 'u8[131072]{0}', space=vmem, size = 0x20000, scoped, tag = 'input window, operand 1, single buffered']
    #allocation5 [shape = 's32[1]{0}', space=sflag, size = 0x4, scoped, tag = 'scoped memory for tpu_custom_call.1']
    #allocation6 [shape = 'u8[262144]{0}', space=vmem, size = 0x40000, scoped, tag = 'input window, operand 3, single buffered']
    %12 = vsyncpa [#allocation3], 0
    %s13 = scalar_lea.sflag [#allocation3], 1
    %14 = vsyncpa %s13, 0
    %15 = vsyncpa [#allocation5], 0
    loop: start=0, step=1, limit=4
    $region2: #{tpu_custom_call.1} parent=1 // loop_pre_header
      _
    $region3: #{tpu_custom_call.1} parent=1 // loop_header
      %s17 = sphi 0, %s21
      %p18 = scmp.ge.s32.totalorder %s17, 4
      %s27 = sphi 0, %s29
      %s30 = sphi 0, %s27
      %s31 = sphi 0, %s30
      %s47 = sphi 0, %s31
      %s51 = sphi 0, %s51
      %s53 = sphi 0, %s51
      %s54 = sphi 0, %s53
      %s68 = sphi 0, %s54
      %s72 = sphi 0, %s72
      %s74 = sphi 0, %s72
      %s75 = sphi 0, %s74
      %s89 = sphi 0, %s75
      %s93 = sphi 0, %s93
      %s95 = sphi 0, %s93
      %s96 = sphi 0, %s95
      %s110 = sphi 0, %s96
      %s114 = sphi 0, %s114
      %s116 = sphi 0, %s114
      %s117 = sphi 0, %s116
      %s131 = sphi 0, %s117
      %s135 = sphi 0, %s135
      %s137 = sphi 0, %s135
      %s138 = sphi 0, %s137
      %s152 = sphi 0, %s138
      %s156 = sphi 0, %s156
      %s158 = sphi 0, %s156
      %s159 = sphi 0, %s158
      %s173 = sphi 0, %s159
      %s179 = sphi 0, %s181
      %s182 = sphi 0, %s179
      %s183 = sphi 0, %s182
      %s199 = sphi 0, %s183
    $region4: #{tpu_custom_call.1} parent=1 // loop_header_branch
      %20 = sbr.rel (%p18) target = $region8
    $region5: #{tpu_custom_call.1} parent=1 // loop_body
      %s22 = ssub.s32 %s17, 1
      %s23 = ssub.s32 %s17, 2
      %s24 = sadd.s32 %s17, 1
      %s25 = ssub.s32 %s17, %s24
      %p26 = scmp.eq.s32.totalorder %s25, 0
      %s28 = sadd.s32 %s27, 1
      %s29 = scalar_select %p26, %s27, %s28
      %p32 = pneg %p26
      %p33 = scmp.eq.s32.totalorder %s17, 1
      %p34 = por %p32, %p33
      %p35 = scmp.ne.s32.totalorder %s27, %s30
      %p36 = scmp.eq.s32.totalorder %s17, 0
      %p37 = por %p35, %p36
      %p38 = scmp.ne.s32.totalorder %s27, %s30
      %p39 = scmp.eq.s32.totalorder %s22, 1
      %p40 = por %p38, %p39
      %p41 = scmp.ne.s32.totalorder %s30, %s31
      %p42 = scmp.eq.s32.totalorder %s22, 0
      %p43 = por %p41, %p42
      %p44 = scmp.ne.s32.totalorder %s30, %s31
      %p45 = scmp.eq.s32.totalorder %s23, 1
      %p46 = por %p44, %p45
      %p48 = scmp.ne.s32.totalorder %s31, %s47
      %p49 = scmp.eq.s32.totalorder %s23, 0
      %p50 = por %p48, %p49
      %s52 = sadd.s32 %s51, 1
      %p55 = scmp.eq.s32.totalorder %s17, 1
      %p56 = scmp.ne.s32.totalorder %s51, %s53
      %p57 = scmp.eq.s32.totalorder %s17, 0
      %p58 = por %p56, %p57
      %p59 = scmp.ne.s32.totalorder %s51, %s53
      %p60 = scmp.eq.s32.totalorder %s22, 1
      %p61 = por %p59, %p60
      %p62 = scmp.ne.s32.totalorder %s53, %s54
      %p63 = scmp.eq.s32.totalorder %s22, 0
      %p64 = por %p62, %p63
      %p65 = scmp.ne.s32.totalorder %s53, %s54
      %p66 = scmp.eq.s32.totalorder %s23, 1
      %p67 = por %p65, %p66
      %p69 = scmp.ne.s32.totalorder %s54, %s68
      %p70 = scmp.eq.s32.totalorder %s23, 0
      %p71 = por %p69, %p70
      %s73 = sadd.s32 %s72, 1
      %p76 = scmp.eq.s32.totalorder %s17, 1
      %p77 = scmp.ne.s32.totalorder %s72, %s74
      %p78 = scmp.eq.s32.totalorder %s17, 0
      %p79 = por %p77, %p78
      %p80 = scmp.ne.s32.totalorder %s72, %s74
      %p81 = scmp.eq.s32.totalorder %s22, 1
      %p82 = por %p80, %p81
      %p83 = scmp.ne.s32.totalorder %s74, %s75
      %p84 = scmp.eq.s32.totalorder %s22, 0
      %p85 = por %p83, %p84
      %p86 = scmp.ne.s32.totalorder %s74, %s75
      %p87 = scmp.eq.s32.totalorder %s23, 1
      %p88 = por %p86, %p87
      %p90 = scmp.ne.s32.totalorder %s75, %s89
      %p91 = scmp.eq.s32.totalorder %s23, 0
      %p92 = por %p90, %p91
      %s94 = sadd.s32 %s93, 1
      %p97 = scmp.eq.s32.totalorder %s17, 1
      %p98 = scmp.ne.s32.totalorder %s93, %s95
      %p99 = scmp.eq.s32.totalorder %s17, 0
      %p100 = por %p98, %p99
      %p101 = scmp.ne.s32.totalorder %s93, %s95
      %p102 = scmp.eq.s32.totalorder %s22, 1
      %p103 = por %p101, %p102
      %p104 = scmp.ne.s32.totalorder %s95, %s96
      %p105 = scmp.eq.s32.totalorder %s22, 0
      %p106 = por %p104, %p105
      %p107 = scmp.ne.s32.totalorder %s95, %s96
      %p108 = scmp.eq.s32.totalorder %s23, 1
      %p109 = por %p107, %p108
      %p111 = scmp.ne.s32.totalorder %s96, %s110
      %p112 = scmp.eq.s32.totalorder %s23, 0
      %p113 = por %p111, %p112
      %s115 = sadd.s32 %s114, 1
      %p118 = scmp.eq.s32.totalorder %s17, 1
      %p119 = scmp.ne.s32.totalorder %s114, %s116
      %p120 = scmp.eq.s32.totalorder %s17, 0
      %p121 = por %p119, %p120
      %p122 = scmp.ne.s32.totalorder %s114, %s116
      %p123 = scmp.eq.s32.totalorder %s22, 1
      %p124 = por %p122, %p123
      %p125 = scmp.ne.s32.totalorder %s116, %s117
      %p126 = scmp.eq.s32.totalorder %s22, 0
      %p127 = por %p125, %p126
      %p128 = scmp.ne.s32.totalorder %s116, %s117
      %p129 = scmp.eq.s32.totalorder %s23, 1
      %p130 = por %p128, %p129
      %p132 = scmp.ne.s32.totalorder %s117, %s131
      %p133 = scmp.eq.s32.totalorder %s23, 0
      %p134 = por %p132, %p133
      %s136 = sadd.s32 %s135, 1
      %p139 = scmp.eq.s32.totalorder %s17, 1
      %p140 = scmp.ne.s32.totalorder %s135, %s137
      %p141 = scmp.eq.s32.totalorder %s17, 0
      %p142 = por %p140, %p141
      %p143 = scmp.ne.s32.totalorder %s135, %s137
      %p144 = scmp.eq.s32.totalorder %s22, 1
      %p145 = por %p143, %p144
      %p146 = scmp.ne.s32.totalorder %s137, %s138
      %p147 = scmp.eq.s32.totalorder %s22, 0
      %p148 = por %p146, %p147
      %p149 = scmp.ne.s32.totalorder %s137, %s138
      %p150 = scmp.eq.s32.totalorder %s23, 1
      %p151 = por %p149, %p150
      %p153 = scmp.ne.s32.totalorder %s138, %s152
      %p154 = scmp.eq.s32.totalorder %s23, 0
      %p155 = por %p153, %p154
      %s157 = sadd.s32 %s156, 1
      %p160 = scmp.eq.s32.totalorder %s17, 1
      %p161 = scmp.ne.s32.totalorder %s156, %s158
      %p162 = scmp.eq.s32.totalorder %s17, 0
      %p163 = por %p161, %p162
      %p164 = scmp.ne.s32.totalorder %s156, %s158
      %p165 = scmp.eq.s32.totalorder %s22, 1
      %p166 = por %p164, %p165
      %p167 = scmp.ne.s32.totalorder %s158, %s159
      %p168 = scmp.eq.s32.totalorder %s22, 0
      %p169 = por %p167, %p168
      %p170 = scmp.ne.s32.totalorder %s158, %s159
      %p171 = scmp.eq.s32.totalorder %s23, 1
      %p172 = por %p170, %p171
      %p174 = scmp.ne.s32.totalorder %s159, %s173
      %p175 = scmp.eq.s32.totalorder %s23, 0
      %p176 = por %p174, %p175
      %s177 = ssub.s32 %s17, %s24
      %p178 = scmp.eq.s32.totalorder %s177, 0
      %s180 = sadd.s32 %s179, 1
      %s181 = scalar_select %p178, %s179, %s180
      %p184 = pneg %p178
      %p185 = scmp.eq.s32.totalorder %s17, 1
      %p186 = por %p184, %p185
      %p187 = scmp.ne.s32.totalorder %s179, %s182
      %p188 = scmp.eq.s32.totalorder %s17, 0
      %p189 = por %p187, %p188
      %p190 = scmp.ne.s32.totalorder %s179, %s182
      %p191 = scmp.eq.s32.totalorder %s22, 1
      %p192 = por %p190, %p191
      %p193 = scmp.ne.s32.totalorder %s182, %s183
      %p194 = scmp.eq.s32.totalorder %s22, 0
      %p195 = por %p193, %p194
      %p196 = scmp.ne.s32.totalorder %s182, %s183
      %p197 = scmp.eq.s32.totalorder %s23, 1
      %p198 = por %p196, %p197
      %p200 = scmp.ne.s32.totalorder %s183, %s199
      %p201 = scmp.eq.s32.totalorder %s23, 0
      %p202 = por %p200, %p201
      %p203 = scmp.le.s32.totalorder 1, %s17
      %p204 = scmp.lt.s32.totalorder %s17, 3
      %p205 = pnand %p203, %p204
      %p206 = pneg %p205
      // Predicated region
      $region9: #{tpu_custom_call.1} parent=5 // pred_check
        _
      $region10: #{tpu_custom_call.1} parent=5 // pred_check_branch
        %208 = sbr.rel (%p205) target = $region12
      $region11: #{tpu_custom_call.1} parent=5 // pred_region
        %s209 = ssub.s32 %s17, 1
        // Predicated region
        $region13: #{tpu_custom_call.1} parent=11 // pred_check
          %p210 = pneg %p64
        $region14: #{tpu_custom_call.1} parent=11 // pred_check_branch
          %212 = sbr.rel (%p210) target = $region16
        $region15: #{tpu_custom_call.1} parent=11 // pred_region
          %s214 = ssub.s32 4096, 4096
          %215 = vsyncadd [#allocation5], %s214
          %s216 = sshll.u32 [#allocation4], 4
          %s217 = int_to_ptr.vmem [resolvable:$true] %s216
          %222 = dma.hbm_to_vmem [thread:$0]  %s1, 4096, %s217, [#allocation5], 256, 256, 16
        $region16: #{tpu_custom_call.1} parent=11 // pred_fallthru
          _
        // Predicated region
        $region17: #{tpu_custom_call.1} parent=11 // pred_check
          %p223 = pneg %p85
        $region18: #{tpu_custom_call.1} parent=11 // pred_check_branch
          %225 = sbr.rel (%p223) target = $region20
        $region19: #{tpu_custom_call.1} parent=11 // pred_region
          _
        $region20: #{tpu_custom_call.1} parent=11 // pred_fallthru
          _
        // Predicated region
        $region21: #{tpu_custom_call.1} parent=11 // pred_check
          %p226 = pneg %p106
        $region22: #{tpu_custom_call.1} parent=11 // pred_check_branch
          %228 = sbr.rel (%p226) target = $region24
        $region23: #{tpu_custom_call.1} parent=11 // pred_region
          %s230 = ssub.s32 8192, 8192
          %231 = vsyncadd [#allocation5], %s230
          %s232 = sshll.u32 [#allocation6], 4
          %s233 = int_to_ptr.vmem [resolvable:$true] %s232
          %238 = dma.hbm_to_vmem [thread:$0]  %s3, 8192, %s233, [#allocation5], 128, 128, 8
        $region24: #{tpu_custom_call.1} parent=11 // pred_fallthru
          _
        // Predicated region
        $region25: #{tpu_custom_call.1} parent=11 // pred_check
          %p239 = pneg %p127
        $region26: #{tpu_custom_call.1} parent=11 // pred_check_branch
          %241 = sbr.rel (%p239) target = $region28
        $region27: #{tpu_custom_call.1} parent=11 // pred_region
          _
        $region28: #{tpu_custom_call.1} parent=11 // pred_fallthru
          _
        // Predicated region
        $region29: #{tpu_custom_call.1} parent=11 // pred_check
          %p242 = pneg %p148
        $region30: #{tpu_custom_call.1} parent=11 // pred_check_branch
          %244 = sbr.rel (%p242) target = $region32
        $region31: #{tpu_custom_call.1} parent=11 // pred_region
          _
        $region32: #{tpu_custom_call.1} parent=11 // pred_fallthru
          _
        // Predicated region
        $region33: #{tpu_custom_call.1} parent=11 // pred_check
          %p245 = pneg %p169
        $region34: #{tpu_custom_call.1} parent=11 // pred_check_branch
          %247 = sbr.rel (%p245) target = $region36
        $region35: #{tpu_custom_call.1} parent=11 // pred_region
          _
        $region36: #{tpu_custom_call.1} parent=11 // pred_fallthru
          _
      $region12: #{tpu_custom_call.1} parent=5 // pred_fallthru
        _
      %p248 = scmp.lt.s32.totalorder %s17, 2
      // Predicated region
      $region37: #{tpu_custom_call.1} parent=5 // pred_check
        %p249 = pneg %p248
      $region38: #{tpu_custom_call.1} parent=5 // pred_check_branch
        %251 = sbr.rel (%p249) target = $region40
      $region39: #{tpu_custom_call.1} parent=5 // pred_region
        // Predicated region
        $region41: #{tpu_custom_call.1} parent=39 // pred_check
          %p252 = pneg %p37
        $region42: #{tpu_custom_call.1} parent=39 // pred_check_branch
          %254 = sbr.rel (%p252) target = $region44
        $region43: #{tpu_custom_call.1} parent=39 // pred_region
          %s255 = sand.u32 %s27, 1
          %s256 = scalar_lea.sflag [#allocation3], %s255
          %s257 = sand.u32 %s27, 1
          %s258 = smul.addr %s257, 128
          %s259 = scalar_lea.vmem [#allocation2], %s258
          %s260 = smul.u32 16, %s17
          %s262 = ssub.s32 2048, 2048
          %263 = vsyncadd %s256, %s262
          %s264 = smul.addr %s260, 128
          %s265 = scalar_lea.hbm %s0, %s264
          %s266 = sshll.u32 %s259, 4
          %s267 = int_to_ptr.vmem [resolvable:$true] %s266
          %272 = dma.hbm_to_vmem [thread:$0]  %s265, 2048, %s267, %s256, 128, 128, 8
        $region44: #{tpu_custom_call.1} parent=39 // pred_fallthru
          _
      $region40: #{tpu_custom_call.1} parent=5 // pred_fallthru
        _
      %p273 = scmp.le.s32.totalorder 1, %s17
      %p274 = scmp.lt.s32.totalorder %s17, 3
      %p275 = pnand %p273, %p274
      %p276 = pneg %p275
      // Predicated region
      $region45: #{tpu_custom_call.1} parent=5 // pred_check
        _
      $region46: #{tpu_custom_call.1} parent=5 // pred_check_branch
        %278 = sbr.rel (%p275) target = $region48
      $region47: #{tpu_custom_call.1} parent=5 // pred_region
        %s279 = ssub.s32 %s17, 1
        %s280 = sand.u32 %s30, 1
        %s281 = scalar_lea.sflag [#allocation3], %s280
        %s282 = sand.u32 %s30, 1
        %s283 = smul.addr %s282, 128
        %s284 = scalar_lea.vmem [#allocation2], %s283
        // Predicated region
        $region49: #{tpu_custom_call.1} parent=47 // pred_check
          %p285 = pneg %p43
        $region50: #{tpu_custom_call.1} parent=47 // pred_check_branch
          %287 = sbr.rel (%p285) target = $region52
        $region51: #{tpu_custom_call.1} parent=47 // pred_region
          %288 = dma.done %s281, 2048
        $region52: #{tpu_custom_call.1} parent=47 // pred_fallthru
          _
        // Predicated region
        $region53: #{tpu_custom_call.1} parent=47 // pred_check
          %p289 = pneg %p64
        $region54: #{tpu_custom_call.1} parent=47 // pred_check_branch
          %291 = sbr.rel (%p289) target = $region56
        $region55: #{tpu_custom_call.1} parent=47 // pred_region
          %292 = dma.done [#allocation5], 4096
        $region56: #{tpu_custom_call.1} parent=47 // pred_fallthru
          _
        // Predicated region
        $region57: #{tpu_custom_call.1} parent=47 // pred_check
          %p293 = pneg %p106
        $region58: #{tpu_custom_call.1} parent=47 // pred_check_branch
          %295 = sbr.rel (%p293) target = $region60
        $region59: #{tpu_custom_call.1} parent=47 // pred_region
          %296 = dma.done [#allocation5], 8192
        $region60: #{tpu_custom_call.1} parent=47 // pred_fallthru
          _
        %s297 = sand.u32 %s30, 1
        %s298 = scalar_lea.sflag [#allocation3], %s297
        %s299 = sand.u32 %s30, 1
        %s300 = smul.addr %s299, 128
        %s301 = scalar_lea.vmem [#allocation2], %s300
        %p302 = pneg %p43
        %p303 = pneg %p40
        %p304 = pneg %p64
        %p305 = pneg %p61
        %p306 = pneg %p85
        %p307 = pneg %p82
        %p308 = pneg %p106
        %p309 = pneg %p103
        %p310 = pneg %p127
        %p311 = pneg %p124
        %p312 = pneg %p148
        %p313 = pneg %p145
        %p314 = pneg %p169
        %p315 = pneg %p166
        %p316 = pneg %p195
        %p317 = pneg %p192
        %s318 = smul.u32 16, %s22
        %p319 = scmp.lt.s32.totalorder %s318, 31
        %s320 = scalar_select %p319, %s318, 31
        %s321 = smul.addr %s320, 8
        %s322 = scalar_lea.vmem %s7, %s321
        %s323 = smul.u32 16, %s22
        %s324 = smul.u32 16, %s22
        %p325 = scmp.lt.s32.totalorder %s324, 31
        %s326 = scalar_select %p325, %s324, 31
        %s327 = smul.addr %s326, 8
        %s328 = scalar_lea.vmem %s7, %s327
        %s329 = smul.u32 16, %s22
        %v331 = vld [vmem:[%s284] sm:$0xff]
        %v332 = vld [vmem:[%s284 + $0x8] sm:$0xff]
        %v333 = vld [vmem:[%s284 + $0x10] sm:$0xff]
        %v334 = vld [vmem:[%s284 + $0x18] sm:$0xff]
        %v335 = vld [vmem:[%s284 + $0x20] sm:$0xff]
        %v336 = vld [vmem:[%s284 + $0x28] sm:$0xff]
        %v337 = vld [vmem:[%s284 + $0x30] sm:$0xff]
        %v338 = vld [vmem:[%s284 + $0x38] sm:$0xff]
        %v339 = vld [vmem:[%s284 + $0x40] sm:$0xff]
        %v340 = vld [vmem:[%s284 + $0x48] sm:$0xff]
        %v341 = vld [vmem:[%s284 + $0x50] sm:$0xff]
        %v342 = vld [vmem:[%s284 + $0x58] sm:$0xff]
        %v343 = vld [vmem:[%s284 + $0x60] sm:$0xff]
        %v344 = vld [vmem:[%s284 + $0x68] sm:$0xff]
        %v345 = vld [vmem:[%s284 + $0x70] sm:$0xff]
        %v346 = vld [vmem:[%s284 + $0x78] sm:$0xff]
        %v347 = vpack.c.bf16 %v332, %v331
        %v348 = vpack.c.bf16 %v334, %v333
        %v349 = vpack.c.bf16 %v336, %v335
        %v350 = vpack.c.bf16 %v338, %v337
        %v351 = vpack.c.bf16 %v340, %v339
        %v352 = vpack.c.bf16 %v342, %v341
        %v353 = vpack.c.bf16 %v344, %v343
        %v354 = vpack.c.bf16 %v346, %v345
        %v355 = vld [vmem:[#allocation4] sm:$0xff]
        %v356 = vld [vmem:[#allocation4 + $0x8] sm:$0xff]
        %v357 = vld [vmem:[#allocation4 + $0x10] sm:$0xff]
        %v358 = vld [vmem:[#allocation4 + $0x18] sm:$0xff]
        %v359 = vld [vmem:[#allocation4 + $0x20] sm:$0xff]
        %v360 = vld [vmem:[#allocation4 + $0x28] sm:$0xff]
        %v361 = vld [vmem:[#allocation4 + $0x30] sm:$0xff]
        %v362 = vld [vmem:[#allocation4 + $0x38] sm:$0xff]
        %v363 = vld [vmem:[#allocation4 + $0x40] sm:$0xff]
        %v364 = vld [vmem:[#allocation4 + $0x48] sm:$0xff]
        %v365 = vld [vmem:[#allocation4 + $0x50] sm:$0xff]
        %v366 = vld [vmem:[#allocation4 + $0x58] sm:$0xff]
        %v367 = vld [vmem:[#allocation4 + $0x60] sm:$0xff]
        %v368 = vld [vmem:[#allocation4 + $0x68] sm:$0xff]
        %v369 = vld [vmem:[#allocation4 + $0x70] sm:$0xff]
        %v370 = vld [vmem:[#allocation4 + $0x78] sm:$0xff]
        %v371 = vld [vmem:[#allocation4 + $0x80] sm:$0xff]
        %v372 = vld [vmem:[#allocation4 + $0x88] sm:$0xff]
        %v373 = vld [vmem:[#allocation4 + $0x90] sm:$0xff]
        %v374 = vld [vmem:[#allocation4 + $0x98] sm:$0xff]
        %v375 = vld [vmem:[#allocation4 + $0xa0] sm:$0xff]
        %v376 = vld [vmem:[#allocation4 + $0xa8] sm:$0xff]
        %v377 = vld [vmem:[#allocation4 + $0xb0] sm:$0xff]
        %v378 = vld [vmem:[#allocation4 + $0xb8] sm:$0xff]
        %v379 = vld [vmem:[#allocation4 + $0xc0] sm:$0xff]
        %v380 = vld [vmem:[#allocation4 + $0xc8] sm:$0xff]
        %v381 = vld [vmem:[#allocation4 + $0xd0] sm:$0xff]
        %v382 = vld [vmem:[#allocation4 + $0xd8] sm:$0xff]
        %v383 = vld [vmem:[#allocation4 + $0xe0] sm:$0xff]
        %v384 = vld [vmem:[#allocation4 + $0xe8] sm:$0xff]
        %v385 = vld [vmem:[#allocation4 + $0xf0] sm:$0xff]
        %v386 = vld [vmem:[#allocation4 + $0xf8] sm:$0xff]
        %v387 = vld [vmem:[%s2] sm:$0xf]
        %v389 = vlaneseq
        %v390 = vshrl.u32 %v389, 7
        %v391 = vsub.s32 0, %v390
        %v392 = vrot.slane %v387, %v391
        %v393 = vlaneseq
        %v394 = vshrl.u32 %v393, 7
        %v395 = vsub.s32 1, %v394
        %v396 = vrot.slane %v387, %v395
        %v397 = vlaneseq
        %v398 = vshrl.u32 %v397, 7
        %v399 = vsub.s32 2, %v398
        %v400 = vrot.slane %v387, %v399
        %v401 = vlaneseq
        %v402 = vshrl.u32 %v401, 7
        %v403 = vsub.s32 3, %v402
        %v404 = vrot.slane %v387, %v403
        %v441 = vunpack.c.l.b16 %v355
        %v442 = vunpack.c.h.b16 %v355
        %v443 = vunpack.c.l.b16 %v356
        %v444 = vunpack.c.h.b16 %v356
        %v445 = vunpack.c.l.b16 %v357
        %v446 = vunpack.c.h.b16 %v357
        %v447 = vunpack.c.l.b16 %v358
        %v448 = vunpack.c.h.b16 %v358
        %v449 = vunpack.c.l.b16 %v359
        %v450 = vunpack.c.h.b16 %v359
        %v451 = vunpack.c.l.b16 %v360
        %v452 = vunpack.c.h.b16 %v360
        %v453 = vunpack.c.l.b16 %v361
        %v454 = vunpack.c.h.b16 %v361
        %v455 = vunpack.c.l.b16 %v362
        %v456 = vunpack.c.h.b16 %v362
        %v457 = vunpack.c.l.b16 %v363
        %v458 = vunpack.c.h.b16 %v363
        %v459 = vunpack.c.l.b16 %v364
        %v460 = vunpack.c.h.b16 %v364
        %v461 = vunpack.c.l.b16 %v365
        %v462 = vunpack.c.h.b16 %v365
        %v463 = vunpack.c.l.b16 %v366
        %v464 = vunpack.c.h.b16 %v366
        %v465 = vunpack.c.l.b16 %v367
        %v466 = vunpack.c.h.b16 %v367
        %v467 = vunpack.c.l.b16 %v368
        %v468 = vunpack.c.h.b16 %v368
        %v469 = vunpack.c.l.b16 %v369
        %v470 = vunpack.c.h.b16 %v369
        %v471 = vunpack.c.l.b16 %v370
        %v472 = vunpack.c.h.b16 %v370
        %v473 = vunpack.c.l.b16 %v371
        %v474 = vunpack.c.h.b16 %v371
        %v475 = vunpack.c.l.b16 %v372
        %v476 = vunpack.c.h.b16 %v372
        %v477 = vunpack.c.l.b16 %v373
        %v478 = vunpack.c.h.b16 %v373
        %v479 = vunpack.c.l.b16 %v374
        %v480 = vunpack.c.h.b16 %v374
        %v481 = vunpack.c.l.b16 %v375
        %v482 = vunpack.c.h.b16 %v375
        %v483 = vunpack.c.l.b16 %v376
        %v484 = vunpack.c.h.b16 %v376
        %v485 = vunpack.c.l.b16 %v377
        %v486 = vunpack.c.h.b16 %v377
        %v487 = vunpack.c.l.b16 %v378
        %v488 = vunpack.c.h.b16 %v378
        %v489 = vunpack.c.l.b16 %v379
        %v490 = vunpack.c.h.b16 %v379
        %v491 = vunpack.c.l.b16 %v380
        %v492 = vunpack.c.h.b16 %v380
        %v493 = vunpack.c.l.b16 %v381
        %v494 = vunpack.c.h.b16 %v381
        %v495 = vunpack.c.l.b16 %v382
        %v496 = vunpack.c.h.b16 %v382
        %v497 = vunpack.c.l.b16 %v383
        %v498 = vunpack.c.h.b16 %v383
        %v499 = vunpack.c.l.b16 %v384
        %v500 = vunpack.c.h.b16 %v384
        %v501 = vunpack.c.l.b16 %v385
        %v502 = vunpack.c.h.b16 %v385
        %v503 = vunpack.c.l.b16 %v386
        %v504 = vunpack.c.h.b16 %v386
        %v505 = vpack.c.b16 %v445, %v441
        %v506 = vpack.c.b16 %v446, %v442
        %v507 = vpack.c.b16 %v447, %v443
        %v508 = vpack.c.b16 %v448, %v444
        %v509 = vpack.c.b16 %v453, %v449
        %v510 = vpack.c.b16 %v454, %v450
        %v511 = vpack.c.b16 %v455, %v451
        %v512 = vpack.c.b16 %v456, %v452
        %v513 = vpack.c.b16 %v461, %v457
        %v514 = vpack.c.b16 %v462, %v458
        %v515 = vpack.c.b16 %v463, %v459
        %v516 = vpack.c.b16 %v464, %v460
        %v517 = vpack.c.b16 %v469, %v465
        %v518 = vpack.c.b16 %v470, %v466
        %v519 = vpack.c.b16 %v471, %v467
        %v520 = vpack.c.b16 %v472, %v468
        %v521 = vpack.c.b16 %v477, %v473
        %v522 = vpack.c.b16 %v478, %v474
        %v523 = vpack.c.b16 %v479, %v475
        %v524 = vpack.c.b16 %v480, %v476
        %v525 = vpack.c.b16 %v485, %v481
        %v526 = vpack.c.b16 %v486, %v482
        %v527 = vpack.c.b16 %v487, %v483
        %v528 = vpack.c.b16 %v488, %v484
        %v529 = vpack.c.b16 %v493, %v489
        %v530 = vpack.c.b16 %v494, %v490
        %v531 = vpack.c.b16 %v495, %v491
        %v532 = vpack.c.b16 %v496, %v492
        %v533 = vpack.c.b16 %v501, %v497
        %v534 = vpack.c.b16 %v502, %v498
        %v535 = vpack.c.b16 %v503, %v499
        %v536 = vpack.c.b16 %v504, %v500
        %569 = vmatprep.subr.bf16.mxu0 %v506
        %570 = vmatpush1.bf16.msra.mxu0 %v505
        %571 = vmatprep.subr.bf16.mxu0 %v510
        %572 = vmatpush1.bf16.msra.mxu0 %v509
        %573 = vmatprep.subr.bf16.mxu0 %v514
        %574 = vmatpush1.bf16.msra.mxu0 %v513
        %575 = vmatprep.subr.bf16.mxu0 %v518
        %576 = vmatpush1.bf16.msra.mxu0 %v517
        %577 = vmatprep.subr.bf16.mxu0 %v522
        %578 = vmatpush1.bf16.msra.mxu0 %v521
        %579 = vmatprep.subr.bf16.mxu0 %v526
        %580 = vmatpush1.bf16.msra.mxu0 %v525
        %581 = vmatprep.subr.bf16.mxu0 %v530
        %582 = vmatpush1.bf16.msra.mxu0 %v529
        %583 = vmatprep.subr.bf16.mxu0 %v534
        %584 = vmatpush1.bf16.msra.mxu0 %v533
        %585 = vmatprep.subr.bf16.mxu0 0
        %586 = vmatpush1.bf16.msra.mxu0 0
        %587 = vmatprep.subr.bf16.mxu0 0
        %588 = vmatpush1.bf16.msra.mxu0 0
        %589 = vmatprep.subr.bf16.mxu0 0
        %590 = vmatpush1.bf16.msra.mxu0 0
        %591 = vmatprep.subr.bf16.mxu0 0
        %592 = vmatpush1.bf16.msra.mxu0 0
        %593 = vmatprep.subr.bf16.mxu0 0
        %594 = vmatpush1.bf16.msra.mxu0 0
        %595 = vmatprep.subr.bf16.mxu0 0
        %596 = vmatpush1.bf16.msra.mxu0 0
        %597 = vmatprep.subr.bf16.mxu0 0
        %598 = vmatpush1.bf16.msra.mxu0 0
        %599 = vmatprep.subr.bf16.mxu0 0
        %600 = vmatpush1.bf16.msra.mxu0 0
        %601 = vmatprep.mubr.bf16.mxu0 0
        %602 = vmatmul.mubr.bf16.gmra.mrb[0].mxu0 %v347
        %v603 = vpop.f32.mrb[0].mxu0
        %v604 = vadd.f32 %v392, %v603
        %v605 = vpop.f32.mrb[0].mxu0
        %v606 = vadd.f32 %v396, %v605
        %v607 = vpop.f32.mrb[0].mxu0
        %v608 = vadd.f32 %v392, %v607
        %v609 = vpop.f32.mrb[0].mxu0
        %v610 = vadd.f32 %v396, %v609
        %611 = vmatprep.mubr.bf16.mxu0 0
        %612 = vmatmul.mubr.bf16.gmra.mrb[0].mxu0 %v348
        %v613 = vpop.f32.mrb[0].mxu0
        %v614 = vadd.f32 %v392, %v613
        %v615 = vpop.f32.mrb[0].mxu0
        %v616 = vadd.f32 %v396, %v615
        %v617 = vpop.f32.mrb[0].mxu0
        %v618 = vadd.f32 %v392, %v617
        %v619 = vpop.f32.mrb[0].mxu0
        %v620 = vadd.f32 %v396, %v619
        %621 = vmatprep.mubr.bf16.mxu0 0
        %622 = vmatmul.mubr.bf16.gmra.mrb[0].mxu0 %v349
        %v623 = vpop.f32.mrb[0].mxu0
        %v624 = vadd.f32 %v392, %v623
        %v625 = vpop.f32.mrb[0].mxu0
        %v626 = vadd.f32 %v396, %v625
        %v627 = vpop.f32.mrb[0].mxu0
        %v628 = vadd.f32 %v392, %v627
        %v629 = vpop.f32.mrb[0].mxu0
        %v630 = vadd.f32 %v396, %v629
        %631 = vmatprep.mubr.bf16.mxu0 0
        %632 = vmatmul.mubr.bf16.gmra.mrb[0].mxu0 %v350
        %v633 = vpop.f32.mrb[0].mxu0
        %v634 = vadd.f32 %v392, %v633
        %v635 = vpop.f32.mrb[0].mxu0
        %v636 = vadd.f32 %v396, %v635
        %v637 = vpop.f32.mrb[0].mxu0
        %v638 = vadd.f32 %v392, %v637
        %v639 = vpop.f32.mrb[0].mxu0
        %v640 = vadd.f32 %v396, %v639
        %641 = vmatprep.mubr.bf16.mxu0 0
        %642 = vmatmul.mubr.bf16.gmra.mrb[0].mxu0 %v351
        %v643 = vpop.f32.mrb[0].mxu0
        %v644 = vadd.f32 %v392, %v643
        %v645 = vpop.f32.mrb[0].mxu0
        %v646 = vadd.f32 %v396, %v645
        %v647 = vpop.f32.mrb[0].mxu0
        %v648 = vadd.f32 %v392, %v647
        %v649 = vpop.f32.mrb[0].mxu0
        %v650 = vadd.f32 %v396, %v649
        %651 = vmatprep.mubr.bf16.mxu0 0
        %652 = vmatmul.mubr.bf16.gmra.mrb[0].mxu0 %v352
        %v653 = vpop.f32.mrb[0].mxu0
        %v654 = vadd.f32 %v392, %v653
        %v655 = vpop.f32.mrb[0].mxu0
        %v656 = vadd.f32 %v396, %v655
        %v657 = vpop.f32.mrb[0].mxu0
        %v658 = vadd.f32 %v392, %v657
        %v659 = vpop.f32.mrb[0].mxu0
        %v660 = vadd.f32 %v396, %v659
        %661 = vmatprep.mubr.bf16.mxu0 0
        %662 = vmatmul.mubr.bf16.gmra.mrb[0].mxu0 %v353
        %v663 = vpop.f32.mrb[0].mxu0
        %v664 = vadd.f32 %v392, %v663
        %v665 = vpop.f32.mrb[0].mxu0
        %v666 = vadd.f32 %v396, %v665
        %v667 = vpop.f32.mrb[0].mxu0
        %v668 = vadd.f32 %v392, %v667
        %v669 = vpop.f32.mrb[0].mxu0
        %v670 = vadd.f32 %v396, %v669
        %671 = vmatprep.mubr.bf16.mxu0 0
        %672 = vmatmul.mubr.bf16.gmra.mrb[0].mxu0 %v354
        %v673 = vpop.f32.mrb[0].mxu0
        %v674 = vadd.f32 %v392, %v673
        %v675 = vpop.f32.mrb[0].mxu0
        %v676 = vadd.f32 %v396, %v675
        %v677 = vpop.f32.mrb[0].mxu0
        %v678 = vadd.f32 %v392, %v677
        %v679 = vpop.f32.mrb[0].mxu0
        %v680 = vadd.f32 %v396, %v679
        %681 = vdwg.mxu0
        %682 = vmatprep.subr.bf16.mxu0 %v508
        %683 = vmatpush1.bf16.msra.mxu0 %v507
        %684 = vmatprep.subr.bf16.mxu0 %v512
        %685 = vmatpush1.bf16.msra.mxu0 %v511
        %686 = vmatprep.subr.bf16.mxu0 %v516
        %687 = vmatpush1.bf16.msra.mxu0 %v515
        %688 = vmatprep.subr.bf16.mxu0 %v520
        %689 = vmatpush1.bf16.msra.mxu0 %v519
        %690 = vmatprep.subr.bf16.mxu0 %v524
        %691 = vmatpush1.bf16.msra.mxu0 %v523
        %692 = vmatprep.subr.bf16.mxu0 %v528
        %693 = vmatpush1.bf16.msra.mxu0 %v527
        %694 = vmatprep.subr.bf16.mxu0 %v532
        %695 = vmatpush1.bf16.msra.mxu0 %v531
        %696 = vmatprep.subr.bf16.mxu0 %v536
        %697 = vmatpush1.bf16.msra.mxu0 %v535
        %698 = vmatprep.subr.bf16.mxu0 0
        %699 = vmatpush1.bf16.msra.mxu0 0
        %700 = vmatprep.subr.bf16.mxu0 0
        %701 = vmatpush1.bf16.msra.mxu0 0
        %702 = vmatprep.subr.bf16.mxu0 0
        %703 = vmatpush1.bf16.msra.mxu0 0
        %704 = vmatprep.subr.bf16.mxu0 0
        %705 = vmatpush1.bf16.msra.mxu0 0
        %706 = vmatprep.subr.bf16.mxu0 0
        %707 = vmatpush1.bf16.msra.mxu0 0
        %708 = vmatprep.subr.bf16.mxu0 0
        %709 = vmatpush1.bf16.msra.mxu0 0
        %710 = vmatprep.subr.bf16.mxu0 0
        %711 = vmatpush1.bf16.msra.mxu0 0
        %712 = vmatprep.subr.bf16.mxu0 0
        %713 = vmatpush1.bf16.msra.mxu0 0
        %714 = vmatprep.mubr.bf16.mxu0 0
        %715 = vmatmul.mubr.bf16.gmra.mrb[0].mxu0 %v347
        %v716 = vpop.f32.mrb[0].mxu0
        %v717 = vadd.f32 %v400, %v716
        %v718 = vpop.f32.mrb[0].mxu0
        %v719 = vadd.f32 %v404, %v718
        %v720 = vpop.f32.mrb[0].mxu0
        %v721 = vadd.f32 %v400, %v720
        %v722 = vpop.f32.mrb[0].mxu0
        %v723 = vadd.f32 %v404, %v722
        %724 = vmatprep.mubr.bf16.mxu0 0
        %725 = vmatmul.mubr.bf16.gmra.mrb[0].mxu0 %v348
        %v726 = vpop.f32.mrb[0].mxu0
        %v727 = vadd.f32 %v400, %v726
        %v728 = vpop.f32.mrb[0].mxu0
        %v729 = vadd.f32 %v404, %v728
        %v730 = vpop.f32.mrb[0].mxu0
        %v731 = vadd.f32 %v400, %v730
        %v732 = vpop.f32.mrb[0].mxu0
        %v733 = vadd.f32 %v404, %v732
        %734 = vmatprep.mubr.bf16.mxu0 0
        %735 = vmatmul.mubr.bf16.gmra.mrb[0].mxu0 %v349
        %v736 = vpop.f32.mrb[0].mxu0
        %v737 = vadd.f32 %v400, %v736
        %v738 = vpop.f32.mrb[0].mxu0
        %v739 = vadd.f32 %v404, %v738
        %v740 = vpop.f32.mrb[0].mxu0
        %v741 = vadd.f32 %v400, %v740
        %v742 = vpop.f32.mrb[0].mxu0
        %v743 = vadd.f32 %v404, %v742
        %744 = vmatprep.mubr.bf16.mxu0 0
        %745 = vmatmul.mubr.bf16.gmra.mrb[0].mxu0 %v350
        %v746 = vpop.f32.mrb[0].mxu0
        %v747 = vadd.f32 %v400, %v746
        %v748 = vpop.f32.mrb[0].mxu0
        %v749 = vadd.f32 %v404, %v748
        %v750 = vpop.f32.mrb[0].mxu0
        %v751 = vadd.f32 %v400, %v750
        %v752 = vpop.f32.mrb[0].mxu0
        %v753 = vadd.f32 %v404, %v752
        %754 = vmatprep.mubr.bf16.mxu0 0
        %755 = vmatmul.mubr.bf16.gmra.mrb[0].mxu0 %v351
        %v756 = vpop.f32.mrb[0].mxu0
        %v757 = vadd.f32 %v400, %v756
        %v758 = vpop.f32.mrb[0].mxu0
        %v759 = vadd.f32 %v404, %v758
        %v760 = vpop.f32.mrb[0].mxu0
        %v761 = vadd.f32 %v400, %v760
        %v762 = vpop.f32.mrb[0].mxu0
        %v763 = vadd.f32 %v404, %v762
        %764 = vmatprep.mubr.bf16.mxu0 0
        %765 = vmatmul.mubr.bf16.gmra.mrb[0].mxu0 %v352
        %v766 = vpop.f32.mrb[0].mxu0
        %v767 = vadd.f32 %v400, %v766
        %v768 = vpop.f32.mrb[0].mxu0
        %v769 = vadd.f32 %v404, %v768
        %v770 = vpop.f32.mrb[0].mxu0
        %v771 = vadd.f32 %v400, %v770
        %v772 = vpop.f32.mrb[0].mxu0
        %v773 = vadd.f32 %v404, %v772
        %774 = vmatprep.mubr.bf16.mxu0 0
        %775 = vmatmul.mubr.bf16.gmra.mrb[0].mxu0 %v353
        %v776 = vpop.f32.mrb[0].mxu0
        %v777 = vadd.f32 %v400, %v776
        %v778 = vpop.f32.mrb[0].mxu0
        %v779 = vadd.f32 %v404, %v778
        %v780 = vpop.f32.mrb[0].mxu0
        %v781 = vadd.f32 %v400, %v780
        %v782 = vpop.f32.mrb[0].mxu0
        %v783 = vadd.f32 %v404, %v782
        %784 = vmatprep.mubr.bf16.mxu0 0
        %785 = vmatmul.mubr.bf16.gmra.mrb[0].mxu0 %v354
        %v786 = vpop.f32.mrb[0].mxu0
        %v787 = vadd.f32 %v400, %v786
        %v788 = vpop.f32.mrb[0].mxu0
        %v789 = vadd.f32 %v404, %v788
        %v790 = vpop.f32.mrb[0].mxu0
        %v791 = vadd.f32 %v400, %v790
        %v792 = vpop.f32.mrb[0].mxu0
        %v793 = vadd.f32 %v404, %v792
        %794 = vdwg.mxu0
        %v795 = vmax.f32 %v604, 0.0
        %v796 = vmax.f32 %v606, 0.0
        %v797 = vmax.f32 %v717, 0.0
        %v798 = vmax.f32 %v719, 0.0
        %v799 = vmax.f32 %v608, 0.0
        %v800 = vmax.f32 %v610, 0.0
        %v801 = vmax.f32 %v721, 0.0
        %v802 = vmax.f32 %v723, 0.0
        %v803 = vmax.f32 %v614, 0.0
        %v804 = vmax.f32 %v616, 0.0
        %v805 = vmax.f32 %v727, 0.0
        %v806 = vmax.f32 %v729, 0.0
        %v807 = vmax.f32 %v618, 0.0
        %v808 = vmax.f32 %v620, 0.0
        %v809 = vmax.f32 %v731, 0.0
        %v810 = vmax.f32 %v733, 0.0
        %v811 = vmax.f32 %v624, 0.0
        %v812 = vmax.f32 %v626, 0.0
        %v813 = vmax.f32 %v737, 0.0
        %v814 = vmax.f32 %v739, 0.0
        %v815 = vmax.f32 %v628, 0.0
        %v816 = vmax.f32 %v630, 0.0
        %v817 = vmax.f32 %v741, 0.0
        %v818 = vmax.f32 %v743, 0.0
        %v819 = vmax.f32 %v634, 0.0
        %v820 = vmax.f32 %v636, 0.0
        %v821 = vmax.f32 %v747, 0.0
        %v822 = vmax.f32 %v749, 0.0
        %v823 = vmax.f32 %v638, 0.0
        %v824 = vmax.f32 %v640, 0.0
        %v825 = vmax.f32 %v751, 0.0
        %v826 = vmax.f32 %v753, 0.0
        %v827 = vmax.f32 %v644, 0.0
        %v828 = vmax.f32 %v646, 0.0
        %v829 = vmax.f32 %v757, 0.0
        %v830 = vmax.f32 %v759, 0.0
        %v831 = vmax.f32 %v648, 0.0
        %v832 = vmax.f32 %v650, 0.0
        %v833 = vmax.f32 %v761, 0.0
        %v834 = vmax.f32 %v763, 0.0
        %v835 = vmax.f32 %v654, 0.0
        %v836 = vmax.f32 %v656, 0.0
        %v837 = vmax.f32 %v767, 0.0
        %v838 = vmax.f32 %v769, 0.0
        %v839 = vmax.f32 %v658, 0.0
        %v840 = vmax.f32 %v660, 0.0
        %v841 = vmax.f32 %v771, 0.0
        %v842 = vmax.f32 %v773, 0.0
        %v843 = vmax.f32 %v664, 0.0
        %v844 = vmax.f32 %v666, 0.0
        %v845 = vmax.f32 %v777, 0.0
        %v846 = vmax.f32 %v779, 0.0
        %v847 = vmax.f32 %v668, 0.0
        %v848 = vmax.f32 %v670, 0.0
        %v849 = vmax.f32 %v781, 0.0
        %v850 = vmax.f32 %v783, 0.0
        %v851 = vmax.f32 %v674, 0.0
        %v852 = vmax.f32 %v676, 0.0
        %v853 = vmax.f32 %v787, 0.0
        %v854 = vmax.f32 %v789, 0.0
        %v855 = vmax.f32 %v678, 0.0
        %v856 = vmax.f32 %v680, 0.0
        %v857 = vmax.f32 %v791, 0.0
        %v858 = vmax.f32 %v793, 0.0
        %v859 = vpack.c.bf16 %v799, %v795
        %v860 = vpack.c.bf16 %v800, %v796
        %v861 = vpack.c.bf16 %v801, %v797
        %v862 = vpack.c.bf16 %v802, %v798
        %v863 = vpack.c.bf16 %v807, %v803
        %v864 = vpack.c.bf16 %v808, %v804
        %v865 = vpack.c.bf16 %v809, %v805
        %v866 = vpack.c.bf16 %v810, %v806
        %v867 = vpack.c.bf16 %v815, %v811
        %v868 = vpack.c.bf16 %v816, %v812
        %v869 = vpack.c.bf16 %v817, %v813
        %v870 = vpack.c.bf16 %v818, %v814
        %v871 = vpack.c.bf16 %v823, %v819
        %v872 = vpack.c.bf16 %v824, %v820
        %v873 = vpack.c.bf16 %v825, %v821
        %v874 = vpack.c.bf16 %v826, %v822
        %v875 = vpack.c.bf16 %v831, %v827
        %v876 = vpack.c.bf16 %v832, %v828
        %v877 = vpack.c.bf16 %v833, %v829
        %v878 = vpack.c.bf16 %v834, %v830
        %v879 = vpack.c.bf16 %v839, %v835
        %v880 = vpack.c.bf16 %v840, %v836
        %v881 = vpack.c.bf16 %v841, %v837
        %v882 = vpack.c.bf16 %v842, %v838
        %v883 = vpack.c.bf16 %v847, %v843
        %v884 = vpack.c.bf16 %v848, %v844
        %v885 = vpack.c.bf16 %v849, %v845
        %v886 = vpack.c.bf16 %v850, %v846
        %v887 = vpack.c.bf16 %v855, %v851
        %v888 = vpack.c.bf16 %v856, %v852
        %v889 = vpack.c.bf16 %v857, %v853
        %v890 = vpack.c.bf16 %v858, %v854
        %v891 = vld [vmem:[#allocation6] sm:$0xff]
        %v892 = vld [vmem:[#allocation6 + $0x8] sm:$0xff]
        %v893 = vld [vmem:[#allocation6 + $0x10] sm:$0xff]
        %v894 = vld [vmem:[#allocation6 + $0x18] sm:$0xff]
        %v895 = vld [vmem:[#allocation6 + $0x20] sm:$0xff]
        %v896 = vld [vmem:[#allocation6 + $0x28] sm:$0xff]
        %v897 = vld [vmem:[#allocation6 + $0x30] sm:$0xff]
        %v898 = vld [vmem:[#allocation6 + $0x38] sm:$0xff]
        %v899 = vld [vmem:[#allocation6 + $0x40] sm:$0xff]
        %v900 = vld [vmem:[#allocation6 + $0x48] sm:$0xff]
        %v901 = vld [vmem:[#allocation6 + $0x50] sm:$0xff]
        %v902 = vld [vmem:[#allocation6 + $0x58] sm:$0xff]
        %v903 = vld [vmem:[#allocation6 + $0x60] sm:$0xff]
        %v904 = vld [vmem:[#allocation6 + $0x68] sm:$0xff]
        %v905 = vld [vmem:[#allocation6 + $0x70] sm:$0xff]
        %v906 = vld [vmem:[#allocation6 + $0x78] sm:$0xff]
        %v907 = vld [vmem:[#allocation6 + $0x80] sm:$0xff]
        %v908 = vld [vmem:[#allocation6 + $0x88] sm:$0xff]
        %v909 = vld [vmem:[#allocation6 + $0x90] sm:$0xff]
        %v910 = vld [vmem:[#allocation6 + $0x98] sm:$0xff]
        %v911 = vld [vmem:[#allocation6 + $0xa0] sm:$0xff]
        %v912 = vld [vmem:[#allocation6 + $0xa8] sm:$0xff]
        %v913 = vld [vmem:[#allocation6 + $0xb0] sm:$0xff]
        %v914 = vld [vmem:[#allocation6 + $0xb8] sm:$0xff]
        %v915 = vld [vmem:[#allocation6 + $0xc0] sm:$0xff]
        %v916 = vld [vmem:[#allocation6 + $0xc8] sm:$0xff]
        %v917 = vld [vmem:[#allocation6 + $0xd0] sm:$0xff]
        %v918 = vld [vmem:[#allocation6 + $0xd8] sm:$0xff]
        %v919 = vld [vmem:[#allocation6 + $0xe0] sm:$0xff]
        %v920 = vld [vmem:[#allocation6 + $0xe8] sm:$0xff]
        %v921 = vld [vmem:[#allocation6 + $0xf0] sm:$0xff]
        %v922 = vld [vmem:[#allocation6 + $0xf8] sm:$0xff]
        %v923 = vld [vmem:[#allocation6 + $0x100] sm:$0xff]
        %v924 = vld [vmem:[#allocation6 + $0x108] sm:$0xff]
        %v925 = vld [vmem:[#allocation6 + $0x110] sm:$0xff]
        %v926 = vld [vmem:[#allocation6 + $0x118] sm:$0xff]
        %v927 = vld [vmem:[#allocation6 + $0x120] sm:$0xff]
        %v928 = vld [vmem:[#allocation6 + $0x128] sm:$0xff]
        %v929 = vld [vmem:[#allocation6 + $0x130] sm:$0xff]
        %v930 = vld [vmem:[#allocation6 + $0x138] sm:$0xff]
        %v931 = vld [vmem:[#allocation6 + $0x140] sm:$0xff]
        %v932 = vld [vmem:[#allocation6 + $0x148] sm:$0xff]
        %v933 = vld [vmem:[#allocation6 + $0x150] sm:$0xff]
        %v934 = vld [vmem:[#allocation6 + $0x158] sm:$0xff]
        %v935 = vld [vmem:[#allocation6 + $0x160] sm:$0xff]
        %v936 = vld [vmem:[#allocation6 + $0x168] sm:$0xff]
        %v937 = vld [vmem:[#allocation6 + $0x170] sm:$0xff]
        %v938 = vld [vmem:[#allocation6 + $0x178] sm:$0xff]
        %v939 = vld [vmem:[#allocation6 + $0x180] sm:$0xff]
        %v940 = vld [vmem:[#allocation6 + $0x188] sm:$0xff]
        %v941 = vld [vmem:[#allocation6 + $0x190] sm:$0xff]
        %v942 = vld [vmem:[#allocation6 + $0x198] sm:$0xff]
        %v943 = vld [vmem:[#allocation6 + $0x1a0] sm:$0xff]
        %v944 = vld [vmem:[#allocation6 + $0x1a8] sm:$0xff]
        %v945 = vld [vmem:[#allocation6 + $0x1b0] sm:$0xff]
        %v946 = vld [vmem:[#allocation6 + $0x1b8] sm:$0xff]
        %v947 = vld [vmem:[#allocation6 + $0x1c0] sm:$0xff]
        %v948 = vld [vmem:[#allocation6 + $0x1c8] sm:$0xff]
        %v949 = vld [vmem:[#allocation6 + $0x1d0] sm:$0xff]
        %v950 = vld [vmem:[#allocation6 + $0x1d8] sm:$0xff]
        %v951 = vld [vmem:[#allocation6 + $0x1e0] sm:$0xff]
        %v952 = vld [vmem:[#allocation6 + $0x1e8] sm:$0xff]
        %v953 = vld [vmem:[#allocation6 + $0x1f0] sm:$0xff]
        %v954 = vld [vmem:[#allocation6 + $0x1f8] sm:$0xff]
        %v955 = vld [vmem:[%s4] sm:$0x3]
        %v957 = vlaneseq
        %v958 = vshrl.u32 %v957, 7
        %v959 = vsub.s32 0, %v958
        %v960 = vrot.slane %v955, %v959
        %v961 = vlaneseq
        %v962 = vshrl.u32 %v961, 7
        %v963 = vsub.s32 1, %v962
        %v964 = vrot.slane %v955, %v963
        %v1031 = vunpack.c.l.b16 %v891
        %v1032 = vunpack.c.h.b16 %v891
        %v1033 = vunpack.c.l.b16 %v892
        %v1034 = vunpack.c.h.b16 %v892
        %v1035 = vunpack.c.l.b16 %v893
        %v1036 = vunpack.c.h.b16 %v893
        %v1037 = vunpack.c.l.b16 %v894
        %v1038 = vunpack.c.h.b16 %v894
        %v1039 = vunpack.c.l.b16 %v895
        %v1040 = vunpack.c.h.b16 %v895
        %v1041 = vunpack.c.l.b16 %v896
        %v1042 = vunpack.c.h.b16 %v896
        %v1043 = vunpack.c.l.b16 %v897
        %v1044 = vunpack.c.h.b16 %v897
        %v1045 = vunpack.c.l.b16 %v898
        %v1046 = vunpack.c.h.b16 %v898
        %v1047 = vunpack.c.l.b16 %v899
        %v1048 = vunpack.c.h.b16 %v899
        %v1049 = vunpack.c.l.b16 %v900
        %v1050 = vunpack.c.h.b16 %v900
        %v1051 = vunpack.c.l.b16 %v901
        %v1052 = vunpack.c.h.b16 %v901
        %v1053 = vunpack.c.l.b16 %v902
        %v1054 = vunpack.c.h.b16 %v902
        %v1055 = vunpack.c.l.b16 %v903
        %v1056 = vunpack.c.h.b16 %v903
        %v1057 = vunpack.c.l.b16 %v904
        %v1058 = vunpack.c.h.b16 %v904
        %v1059 = vunpack.c.l.b16 %v905
        %v1060 = vunpack.c.h.b16 %v905
        %v1061 = vunpack.c.l.b16 %v906
        %v1062 = vunpack.c.h.b16 %v906
        %v1063 = vunpack.c.l.b16 %v907
        %v1064 = vunpack.c.h.b16 %v907
        %v1065 = vunpack.c.l.b16 %v908
        %v1066 = vunpack.c.h.b16 %v908
        %v1067 = vunpack.c.l.b16 %v909
        %v1068 = vunpack.c.h.b16 %v909
        %v1069 = vunpack.c.l.b16 %v910
        %v1070 = vunpack.c.h.b16 %v910
        %v1071 = vunpack.c.l.b16 %v911
        %v1072 = vunpack.c.h.b16 %v911
        %v1073 = vunpack.c.l.b16 %v912
        %v1074 = vunpack.c.h.b16 %v912
        %v1075 = vunpack.c.l.b16 %v913
        %v1076 = vunpack.c.h.b16 %v913
        %v1077 = vunpack.c.l.b16 %v914
        %v1078 = vunpack.c.h.b16 %v914
        %v1079 = vunpack.c.l.b16 %v915
        %v1080 = vunpack.c.h.b16 %v915
        %v1081 = vunpack.c.l.b16 %v916
        %v1082 = vunpack.c.h.b16 %v916
        %v1083 = vunpack.c.l.b16 %v917
        %v1084 = vunpack.c.h.b16 %v917
        %v1085 = vunpack.c.l.b16 %v918
        %v1086 = vunpack.c.h.b16 %v918
        %v1087 = vunpack.c.l.b16 %v919
        %v1088 = vunpack.c.h.b16 %v919
        %v1089 = vunpack.c.l.b16 %v920
        %v1090 = vunpack.c.h.b16 %v920
        %v1091 = vunpack.c.l.b16 %v921
        %v1092 = vunpack.c.h.b16 %v921
        %v1093 = vunpack.c.l.b16 %v922
        %v1094 = vunpack.c.h.b16 %v922
        %v1095 = vunpack.c.l.b16 %v923
        %v1096 = vunpack.c.h.b16 %v923
        %v1097 = vunpack.c.l.b16 %v924
        %v1098 = vunpack.c.h.b16 %v924
        %v1099 = vunpack.c.l.b16 %v925
        %v1100 = vunpack.c.h.b16 %v925
        %v1101 = vunpack.c.l.b16 %v926
        %v1102 = vunpack.c.h.b16 %v926
        %v1103 = vunpack.c.l.b16 %v927
        %v1104 = vunpack.c.h.b16 %v927
        %v1105 = vunpack.c.l.b16 %v928
        %v1106 = vunpack.c.h.b16 %v928
        %v1107 = vunpack.c.l.b16 %v929
        %v1108 = vunpack.c.h.b16 %v929
        %v1109 = vunpack.c.l.b16 %v930
        %v1110 = vunpack.c.h.b16 %v930
        %v1111 = vunpack.c.l.b16 %v931
        %v1112 = vunpack.c.h.b16 %v931
        %v1113 = vunpack.c.l.b16 %v932
        %v1114 = vunpack.c.h.b16 %v932
        %v1115 = vunpack.c.l.b16 %v933
        %v1116 = vunpack.c.h.b16 %v933
        %v1117 = vunpack.c.l.b16 %v934
        %v1118 = vunpack.c.h.b16 %v934
        %v1119 = vunpack.c.l.b16 %v935
        %v1120 = vunpack.c.h.b16 %v935
        %v1121 = vunpack.c.l.b16 %v936
        %v1122 = vunpack.c.h.b16 %v936
        %v1123 = vunpack.c.l.b16 %v937
        %v1124 = vunpack.c.h.b16 %v937
        %v1125 = vunpack.c.l.b16 %v938
        %v1126 = vunpack.c.h.b16 %v938
        %v1127 = vunpack.c.l.b16 %v939
        %v1128 = vunpack.c.h.b16 %v939
        %v1129 = vunpack.c.l.b16 %v940
        %v1130 = vunpack.c.h.b16 %v940
        %v1131 = vunpack.c.l.b16 %v941
        %v1132 = vunpack.c.h.b16 %v941
        %v1133 = vunpack.c.l.b16 %v942
        %v1134 = vunpack.c.h.b16 %v942
        %v1135 = vunpack.c.l.b16 %v943
        %v1136 = vunpack.c.h.b16 %v943
        %v1137 = vunpack.c.l.b16 %v944
        %v1138 = vunpack.c.h.b16 %v944
        %v1139 = vunpack.c.l.b16 %v945
        %v1140 = vunpack.c.h.b16 %v945
        %v1141 = vunpack.c.l.b16 %v946
        %v1142 = vunpack.c.h.b16 %v946
        %v1143 = vunpack.c.l.b16 %v947
        %v1144 = vunpack.c.h.b16 %v947
        %v1145 = vunpack.c.l.b16 %v948
        %v1146 = vunpack.c.h.b16 %v948
        %v1147 = vunpack.c.l.b16 %v949
        %v1148 = vunpack.c.h.b16 %v949
        %v1149 = vunpack.c.l.b16 %v950
        %v1150 = vunpack.c.h.b16 %v950
        %v1151 = vunpack.c.l.b16 %v951
        %v1152 = vunpack.c.h.b16 %v951
        %v1153 = vunpack.c.l.b16 %v952
        %v1154 = vunpack.c.h.b16 %v952
        %v1155 = vunpack.c.l.b16 %v953
        %v1156 = vunpack.c.h.b16 %v953
        %v1157 = vunpack.c.l.b16 %v954
        %v1158 = vunpack.c.h.b16 %v954
        %v1159 = vpack.c.b16 %v1033, %v1031
        %v1160 = vpack.c.b16 %v1034, %v1032
        %v1161 = vpack.c.b16 %v1037, %v1035
        %v1162 = vpack.c.b16 %v1038, %v1036
        %v1163 = vpack.c.b16 %v1041, %v1039
        %v1164 = vpack.c.b16 %v1042, %v1040
        %v1165 = vpack.c.b16 %v1045, %v1043
        %v1166 = vpack.c.b16 %v1046, %v1044
        %v1167 = vpack.c.b16 %v1049, %v1047
        %v1168 = vpack.c.b16 %v1050, %v1048
        %v1169 = vpack.c.b16 %v1053, %v1051
        %v1170 = vpack.c.b16 %v1054, %v1052
        %v1171 = vpack.c.b16 %v1057, %v1055
        %v1172 = vpack.c.b16 %v1058, %v1056
        %v1173 = vpack.c.b16 %v1061, %v1059
        %v1174 = vpack.c.b16 %v1062, %v1060
        %v1175 = vpack.c.b16 %v1065, %v1063
        %v1176 = vpack.c.b16 %v1066, %v1064
        %v1177 = vpack.c.b16 %v1069, %v1067
        %v1178 = vpack.c.b16 %v1070, %v1068
        %v1179 = vpack.c.b16 %v1073, %v1071
        %v1180 = vpack.c.b16 %v1074, %v1072
        %v1181 = vpack.c.b16 %v1077, %v1075
        %v1182 = vpack.c.b16 %v1078, %v1076
        %v1183 = vpack.c.b16 %v1081, %v1079
        %v1184 = vpack.c.b16 %v1082, %v1080
        %v1185 = vpack.c.b16 %v1085, %v1083
        %v1186 = vpack.c.b16 %v1086, %v1084
        %v1187 = vpack.c.b16 %v1089, %v1087
        %v1188 = vpack.c.b16 %v1090, %v1088
        %v1189 = vpack.c.b16 %v1093, %v1091
        %v1190 = vpack.c.b16 %v1094, %v1092
        %v1191 = vpack.c.b16 %v1097, %v1095
        %v1192 = vpack.c.b16 %v1098, %v1096
        %v1193 = vpack.c.b16 %v1101, %v1099
        %v1194 = vpack.c.b16 %v1102, %v1100
        %v1195 = vpack.c.b16 %v1105, %v1103
        %v1196 = vpack.c.b16 %v1106, %v1104
        %v1197 = vpack.c.b16 %v1109, %v1107
        %v1198 = vpack.c.b16 %v1110, %v1108
        %v1199 = vpack.c.b16 %v1113, %v1111
        %v1200 = vpack.c.b16 %v1114, %v1112
        %v1201 = vpack.c.b16 %v1117, %v1115
        %v1202 = vpack.c.b16 %v1118, %v1116
        %v1203 = vpack.c.b16 %v1121, %v1119
        %v1204 = vpack.c.b16 %v1122, %v1120
        %v1205 = vpack.c.b16 %v1125, %v1123
        %v1206 = vpack.c.b16 %v1126, %v1124
        %v1207 = vpack.c.b16 %v1129, %v1127
        %v1208 = vpack.c.b16 %v1130, %v1128
        %v1209 = vpack.c.b16 %v1133, %v1131
        %v1210 = vpack.c.b16 %v1134, %v1132
        %v1211 = vpack.c.b16 %v1137, %v1135
        %v1212 = vpack.c.b16 %v1138, %v1136
        %v1213 = vpack.c.b16 %v1141, %v1139
        %v1214 = vpack.c.b16 %v1142, %v1140
        %v1215 = vpack.c.b16 %v1145, %v1143
        %v1216 = vpack.c.b16 %v1146, %v1144
        %v1217 = vpack.c.b16 %v1149, %v1147
        %v1218 = vpack.c.b16 %v1150, %v1148
        %v1219 = vpack.c.b16 %v1153, %v1151
        %v1220 = vpack.c.b16 %v1154, %v1152
        %v1221 = vpack.c.b16 %v1157, %v1155
        %v1222 = vpack.c.b16 %v1158, %v1156
        %1287 = vmatprep.subr.bf16.mxu0 %v1160
        %1288 = vmatpush1.bf16.msra.mxu0 %v1159
        %1289 = vmatprep.subr.bf16.mxu0 %v1162
        %1290 = vmatpush1.bf16.msra.mxu0 %v1161
        %1291 = vmatprep.subr.bf16.mxu0 %v1164
        %1292 = vmatpush1.bf16.msra.mxu0 %v1163
        %1293 = vmatprep.subr.bf16.mxu0 %v1166
        %1294 = vmatpush1.bf16.msra.mxu0 %v1165
        %1295 = vmatprep.subr.bf16.mxu0 %v1168
        %1296 = vmatpush1.bf16.msra.mxu0 %v1167
        %1297 = vmatprep.subr.bf16.mxu0 %v1170
        %1298 = vmatpush1.bf16.msra.mxu0 %v1169
        %1299 = vmatprep.subr.bf16.mxu0 %v1172
        %1300 = vmatpush1.bf16.msra.mxu0 %v1171
        %1301 = vmatprep.subr.bf16.mxu0 %v1174
        %1302 = vmatpush1.bf16.msra.mxu0 %v1173
        %1303 = vmatprep.subr.bf16.mxu0 %v1176
        %1304 = vmatpush1.bf16.msra.mxu0 %v1175
        %1305 = vmatprep.subr.bf16.mxu0 %v1178
        %1306 = vmatpush1.bf16.msra.mxu0 %v1177
        %1307 = vmatprep.subr.bf16.mxu0 %v1180
        %1308 = vmatpush1.bf16.msra.mxu0 %v1179
        %1309 = vmatprep.subr.bf16.mxu0 %v1182
        %1310 = vmatpush1.bf16.msra.mxu0 %v1181
        %1311 = vmatprep.subr.bf16.mxu0 %v1184
        %1312 = vmatpush1.bf16.msra.mxu0 %v1183
        %1313 = vmatprep.subr.bf16.mxu0 %v1186
        %1314 = vmatpush1.bf16.msra.mxu0 %v1185
        %1315 = vmatprep.subr.bf16.mxu0 %v1188
        %1316 = vmatpush1.bf16.msra.mxu0 %v1187
        %1317 = vmatprep.subr.bf16.mxu0 %v1190
        %1318 = vmatpush1.bf16.msra.mxu0 %v1189
        %1319 = vmatprep.mubr.bf16.mxu0 %v860
        %1320 = vmatmul.mubr.bf16.gmra.mrb[0].mxu0 %v859
        %v1321 = vpop.f32.mrb[0].mxu0
        %v1322 = vadd.f32 %v960, %v1321
        %v1323 = vpop.f32.mrb[0].mxu0
        %v1324 = vadd.f32 %v964, %v1323
        %v1325 = vpop.f32.mrb[0].mxu0
        %v1326 = vadd.f32 %v960, %v1325
        %v1327 = vpop.f32.mrb[0].mxu0
        %v1328 = vadd.f32 %v964, %v1327
        %1329 = vmatprep.mubr.bf16.mxu0 %v864
        %1330 = vmatmul.mubr.bf16.gmra.mrb[0].mxu0 %v863
        %v1331 = vpop.f32.mrb[0].mxu0
        %v1332 = vadd.f32 %v960, %v1331
        %v1333 = vpop.f32.mrb[0].mxu0
        %v1334 = vadd.f32 %v964, %v1333
        %v1335 = vpop.f32.mrb[0].mxu0
        %v1336 = vadd.f32 %v960, %v1335
        %v1337 = vpop.f32.mrb[0].mxu0
        %v1338 = vadd.f32 %v964, %v1337
        %1339 = vmatprep.mubr.bf16.mxu0 %v868
        %1340 = vmatmul.mubr.bf16.gmra.mrb[0].mxu0 %v867
        %v1341 = vpop.f32.mrb[0].mxu0
        %v1342 = vadd.f32 %v960, %v1341
        %v1343 = vpop.f32.mrb[0].mxu0
        %v1344 = vadd.f32 %v964, %v1343
        %v1345 = vpop.f32.mrb[0].mxu0
        %v1346 = vadd.f32 %v960, %v1345
        %v1347 = vpop.f32.mrb[0].mxu0
        %v1348 = vadd.f32 %v964, %v1347
        %1349 = vmatprep.mubr.bf16.mxu0 %v872
        %1350 = vmatmul.mubr.bf16.gmra.mrb[0].mxu0 %v871
        %v1351 = vpop.f32.mrb[0].mxu0
        %v1352 = vadd.f32 %v960, %v1351
        %v1353 = vpop.f32.mrb[0].mxu0
        %v1354 = vadd.f32 %v964, %v1353
        %v1355 = vpop.f32.mrb[0].mxu0
        %v1356 = vadd.f32 %v960, %v1355
        %v1357 = vpop.f32.mrb[0].mxu0
        %v1358 = vadd.f32 %v964, %v1357
        %1359 = vmatprep.mubr.bf16.mxu0 %v876
        %1360 = vmatmul.mubr.bf16.gmra.mrb[0].mxu0 %v875
        %v1361 = vpop.f32.mrb[0].mxu0
        %v1362 = vadd.f32 %v960, %v1361
        %v1363 = vpop.f32.mrb[0].mxu0
        %v1364 = vadd.f32 %v964, %v1363
        %v1365 = vpop.f32.mrb[0].mxu0
        %v1366 = vadd.f32 %v960, %v1365
        %v1367 = vpop.f32.mrb[0].mxu0
        %v1368 = vadd.f32 %v964, %v1367
        %1369 = vmatprep.mubr.bf16.mxu0 %v880
        %1370 = vmatmul.mubr.bf16.gmra.mrb[0].mxu0 %v879
        %v1371 = vpop.f32.mrb[0].mxu0
        %v1372 = vadd.f32 %v960, %v1371
        %v1373 = vpop.f32.mrb[0].mxu0
        %v1374 = vadd.f32 %v964, %v1373
        %v1375 = vpop.f32.mrb[0].mxu0
        %v1376 = vadd.f32 %v960, %v1375
        %v1377 = vpop.f32.mrb[0].mxu0
        %v1378 = vadd.f32 %v964, %v1377
        %1379 = vmatprep.mubr.bf16.mxu0 %v884
        %1380 = vmatmul.mubr.bf16.gmra.mrb[0].mxu0 %v883
        %v1381 = vpop.f32.mrb[0].mxu0
        %v1382 = vadd.f32 %v960, %v1381
        %v1383 = vpop.f32.mrb[0].mxu0
        %v1384 = vadd.f32 %v964, %v1383
        %v1385 = vpop.f32.mrb[0].mxu0
        %v1386 = vadd.f32 %v960, %v1385
        %v1387 = vpop.f32.mrb[0].mxu0
        %v1388 = vadd.f32 %v964, %v1387
        %1389 = vmatprep.mubr.bf16.mxu0 %v888
        %1390 = vmatmul.mubr.bf16.gmra.mrb[0].mxu0 %v887
        %v1391 = vpop.f32.mrb[0].mxu0
        %v1392 = vadd.f32 %v960, %v1391
        %v1393 = vpop.f32.mrb[0].mxu0
        %v1394 = vadd.f32 %v964, %v1393
        %v1395 = vpop.f32.mrb[0].mxu0
        %v1396 = vadd.f32 %v960, %v1395
        %v1397 = vpop.f32.mrb[0].mxu0
        %v1398 = vadd.f32 %v964, %v1397
        %1399 = vdwg.mxu0
        %1400 = vmatprep.subr.bf16.mxu0 %v1192
        %1401 = vmatpush1.bf16.msra.mxu0 %v1191
        %1402 = vmatprep.subr.bf16.mxu0 %v1194
        %1403 = vmatpush1.bf16.msra.mxu0 %v1193
        %1404 = vmatprep.subr.bf16.mxu0 %v1196
        %1405 = vmatpush1.bf16.msra.mxu0 %v1195
        %1406 = vmatprep.subr.bf16.mxu0 %v1198
        %1407 = vmatpush1.bf16.msra.mxu0 %v1197
        %1408 = vmatprep.subr.bf16.mxu0 %v1200
        %1409 = vmatpush1.bf16.msra.mxu0 %v1199
        %1410 = vmatprep.subr.bf16.mxu0 %v1202
        %1411 = vmatpush1.bf16.msra.mxu0 %v1201
        %1412 = vmatprep.subr.bf16.mxu0 %v1204
        %1413 = vmatpush1.bf16.msra.mxu0 %v1203
        %1414 = vmatprep.subr.bf16.mxu0 %v1206
        %1415 = vmatpush1.bf16.msra.mxu0 %v1205
        %1416 = vmatprep.subr.bf16.mxu0 %v1208
        %1417 = vmatpush1.bf16.msra.mxu0 %v1207
        %1418 = vmatprep.subr.bf16.mxu0 %v1210
        %1419 = vmatpush1.bf16.msra.mxu0 %v1209
        %1420 = vmatprep.subr.bf16.mxu0 %v1212
        %1421 = vmatpush1.bf16.msra.mxu0 %v1211
        %1422 = vmatprep.subr.bf16.mxu0 %v1214
        %1423 = vmatpush1.bf16.msra.mxu0 %v1213
        %1424 = vmatprep.subr.bf16.mxu0 %v1216
        %1425 = vmatpush1.bf16.msra.mxu0 %v1215
        %1426 = vmatprep.subr.bf16.mxu0 %v1218
        %1427 = vmatpush1.bf16.msra.mxu0 %v1217
        %1428 = vmatprep.subr.bf16.mxu0 %v1220
        %1429 = vmatpush1.bf16.msra.mxu0 %v1219
        %1430 = vmatprep.subr.bf16.mxu0 %v1222
        %1431 = vmatpush1.bf16.msra.mxu0 %v1221
        %1432 = vmatprep.mubr.bf16.mxu0 %v862
        %1433 = vmatmul.mubr.bf16.gmra.mrb[0].mxu0 %v861
        %v1434 = vpop.f32.mrb[0].mxu0
        %v1435 = vadd.f32 %v1322, %v1434
        %v1436 = vpop.f32.mrb[0].mxu0
        %v1437 = vadd.f32 %v1324, %v1436
        %v1438 = vpop.f32.mrb[0].mxu0
        %v1439 = vadd.f32 %v1326, %v1438
        %v1440 = vpop.f32.mrb[0].mxu0
        %v1441 = vadd.f32 %v1328, %v1440
        %1442 = vmatprep.mubr.bf16.mxu0 %v866
        %1443 = vmatmul.mubr.bf16.gmra.mrb[0].mxu0 %v865
        %v1444 = vpop.f32.mrb[0].mxu0
        %v1445 = vadd.f32 %v1332, %v1444
        %v1446 = vpop.f32.mrb[0].mxu0
        %v1447 = vadd.f32 %v1334, %v1446
        %v1448 = vpop.f32.mrb[0].mxu0
        %v1449 = vadd.f32 %v1336, %v1448
        %v1450 = vpop.f32.mrb[0].mxu0
        %v1451 = vadd.f32 %v1338, %v1450
        %1452 = vmatprep.mubr.bf16.mxu0 %v870
        %1453 = vmatmul.mubr.bf16.gmra.mrb[0].mxu0 %v869
        %v1454 = vpop.f32.mrb[0].mxu0
        %v1455 = vadd.f32 %v1342, %v1454
        %v1456 = vpop.f32.mrb[0].mxu0
        %v1457 = vadd.f32 %v1344, %v1456
        %v1458 = vpop.f32.mrb[0].mxu0
        %v1459 = vadd.f32 %v1346, %v1458
        %v1460 = vpop.f32.mrb[0].mxu0
        %v1461 = vadd.f32 %v1348, %v1460
        %1462 = vmatprep.mubr.bf16.mxu0 %v874
        %1463 = vmatmul.mubr.bf16.gmra.mrb[0].mxu0 %v873
        %v1464 = vpop.f32.mrb[0].mxu0
        %v1465 = vadd.f32 %v1352, %v1464
        %v1466 = vpop.f32.mrb[0].mxu0
        %v1467 = vadd.f32 %v1354, %v1466
        %v1468 = vpop.f32.mrb[0].mxu0
        %v1469 = vadd.f32 %v1356, %v1468
        %v1470 = vpop.f32.mrb[0].mxu0
        %v1471 = vadd.f32 %v1358, %v1470
        %1472 = vmatprep.mubr.bf16.mxu0 %v878
        %1473 = vmatmul.mubr.bf16.gmra.mrb[0].mxu0 %v877
        %v1474 = vpop.f32.mrb[0].mxu0
        %v1475 = vadd.f32 %v1362, %v1474
        %v1476 = vpop.f32.mrb[0].mxu0
        %v1477 = vadd.f32 %v1364, %v1476
        %v1478 = vpop.f32.mrb[0].mxu0
        %v1479 = vadd.f32 %v1366, %v1478
        %v1480 = vpop.f32.mrb[0].mxu0
        %v1481 = vadd.f32 %v1368, %v1480
        %1482 = vmatprep.mubr.bf16.mxu0 %v882
        %1483 = vmatmul.mubr.bf16.gmra.mrb[0].mxu0 %v881
        %v1484 = vpop.f32.mrb[0].mxu0
        %v1485 = vadd.f32 %v1372, %v1484
        %v1486 = vpop.f32.mrb[0].mxu0
        %v1487 = vadd.f32 %v1374, %v1486
        %v1488 = vpop.f32.mrb[0].mxu0
        %v1489 = vadd.f32 %v1376, %v1488
        %v1490 = vpop.f32.mrb[0].mxu0
        %v1491 = vadd.f32 %v1378, %v1490
        %1492 = vmatprep.mubr.bf16.mxu0 %v886
        %1493 = vmatmul.mubr.bf16.gmra.mrb[0].mxu0 %v885
        %v1494 = vpop.f32.mrb[0].mxu0
        %v1495 = vadd.f32 %v1382, %v1494
        %v1496 = vpop.f32.mrb[0].mxu0
        %v1497 = vadd.f32 %v1384, %v1496
        %v1498 = vpop.f32.mrb[0].mxu0
        %v1499 = vadd.f32 %v1386, %v1498
        %v1500 = vpop.f32.mrb[0].mxu0
        %v1501 = vadd.f32 %v1388, %v1500
        %1502 = vmatprep.mubr.bf16.mxu0 %v890
        %1503 = vmatmul.mubr.bf16.gmra.mrb[0].mxu0 %v889
        %v1504 = vpop.f32.mrb[0].mxu0
        %v1505 = vadd.f32 %v1392, %v1504
        %v1506 = vpop.f32.mrb[0].mxu0
        %v1507 = vadd.f32 %v1394, %v1506
        %v1508 = vpop.f32.mrb[0].mxu0
        %v1509 = vadd.f32 %v1396, %v1508
        %v1510 = vpop.f32.mrb[0].mxu0
        %v1511 = vadd.f32 %v1398, %v1510
        %1512 = vdwg.mxu0
        %v1513 = vmax.f32 %v1435, 0.0
        %v1514 = vmax.f32 %v1437, 0.0
        %v1515 = vmax.f32 %v1439, 0.0
        %v1516 = vmax.f32 %v1441, 0.0
        %v1517 = vmax.f32 %v1445, 0.0
        %v1518 = vmax.f32 %v1447, 0.0
        %v1519 = vmax.f32 %v1449, 0.0
        %v1520 = vmax.f32 %v1451, 0.0
        %v1521 = vmax.f32 %v1455, 0.0
        %v1522 = vmax.f32 %v1457, 0.0
        %v1523 = vmax.f32 %v1459, 0.0
        %v1524 = vmax.f32 %v1461, 0.0
        %v1525 = vmax.f32 %v1465, 0.0
        %v1526 = vmax.f32 %v1467, 0.0
        %v1527 = vmax.f32 %v1469, 0.0
        %v1528 = vmax.f32 %v1471, 0.0
        %v1529 = vmax.f32 %v1475, 0.0
        %v1530 = vmax.f32 %v1477, 0.0
        %v1531 = vmax.f32 %v1479, 0.0
        %v1532 = vmax.f32 %v1481, 0.0
        %v1533 = vmax.f32 %v1485, 0.0
        %v1534 = vmax.f32 %v1487, 0.0
        %v1535 = vmax.f32 %v1489, 0.0
        %v1536 = vmax.f32 %v1491, 0.0
        %v1537 = vmax.f32 %v1495, 0.0
        %v1538 = vmax.f32 %v1497, 0.0
        %v1539 = vmax.f32 %v1499, 0.0
        %v1540 = vmax.f32 %v1501, 0.0
        %v1541 = vmax.f32 %v1505, 0.0
        %v1542 = vmax.f32 %v1507, 0.0
        %v1543 = vmax.f32 %v1509, 0.0
        %v1544 = vmax.f32 %v1511, 0.0
        %v1545 = vpack.c.bf16 %v1515, %v1513
        %v1546 = vpack.c.bf16 %v1516, %v1514
        %v1547 = vpack.c.bf16 %v1519, %v1517
        %v1548 = vpack.c.bf16 %v1520, %v1518
        %v1549 = vpack.c.bf16 %v1523, %v1521
        %v1550 = vpack.c.bf16 %v1524, %v1522
        %v1551 = vpack.c.bf16 %v1527, %v1525
        %v1552 = vpack.c.bf16 %v1528, %v1526
        %v1553 = vpack.c.bf16 %v1531, %v1529
        %v1554 = vpack.c.bf16 %v1532, %v1530
        %v1555 = vpack.c.bf16 %v1535, %v1533
        %v1556 = vpack.c.bf16 %v1536, %v1534
        %v1557 = vpack.c.bf16 %v1539, %v1537
        %v1558 = vpack.c.bf16 %v1540, %v1538
        %v1559 = vpack.c.bf16 %v1543, %v1541
        %v1560 = vpack.c.bf16 %v1544, %v1542
        %v1561 = vld [vmem:[%s5] sm:$0xf]
        %v1562 = vld [vmem:[%s5 + $0x4] sm:$0xf]
        %v1563 = vld [vmem:[%s5 + $0x8] sm:$0xf]
        %v1564 = vld [vmem:[%s5 + $0xc] sm:$0xf]
        %v1565 = vld [vmem:[%s5 + $0x10] sm:$0xf]
        %v1566 = vld [vmem:[%s5 + $0x14] sm:$0xf]
        %v1567 = vld [vmem:[%s5 + $0x18] sm:$0xf]
        %v1568 = vld [vmem:[%s5 + $0x1c] sm:$0xf]
        %v1569 = vld [vmem:[%s5 + $0x20] sm:$0xf]
        %v1570 = vld [vmem:[%s5 + $0x24] sm:$0xf]
        %v1571 = vld [vmem:[%s5 + $0x28] sm:$0xf]
        %v1572 = vld [vmem:[%s5 + $0x2c] sm:$0xf]
        %v1573 = vld [vmem:[%s5 + $0x30] sm:$0xf]
        %v1574 = vld [vmem:[%s5 + $0x34] sm:$0xf]
        %v1575 = vld [vmem:[%s5 + $0x38] sm:$0xf]
        %v1576 = vld [vmem:[%s5 + $0x3c] sm:$0xf]
        %v1577 = vld [vmem:[%s5 + $0x40] sm:$0xf]
        %v1578 = vld [vmem:[%s5 + $0x44] sm:$0xf]
        %v1579 = vld [vmem:[%s5 + $0x48] sm:$0xf]
        %v1580 = vld [vmem:[%s5 + $0x4c] sm:$0xf]
        %v1581 = vld [vmem:[%s5 + $0x50] sm:$0xf]
        %v1582 = vld [vmem:[%s5 + $0x54] sm:$0xf]
        %v1583 = vld [vmem:[%s5 + $0x58] sm:$0xf]
        %v1584 = vld [vmem:[%s5 + $0x5c] sm:$0xf]
        %v1585 = vld [vmem:[%s5 + $0x60] sm:$0xf]
        %v1586 = vld [vmem:[%s5 + $0x64] sm:$0xf]
        %v1587 = vld [vmem:[%s5 + $0x68] sm:$0xf]
        %v1588 = vld [vmem:[%s5 + $0x6c] sm:$0xf]
        %v1589 = vld [vmem:[%s5 + $0x70] sm:$0xf]
        %v1590 = vld [vmem:[%s5 + $0x74] sm:$0xf]
        %v1591 = vld [vmem:[%s5 + $0x78] sm:$0xf]
        %v1592 = vld [vmem:[%s5 + $0x7c] sm:$0xf]
        %v1593 = vld [vmem:[%s6] sm:$0x1]
        %v1595 = vlaneseq
        %v1596 = vshrl.u32 %v1595, 7
        %v1597 = vsub.s32 0, %v1596
        %v1598 = vrot.slane %v1593, %v1597
        %v1632 = vunpack.c.l.b16 %v1561
        %v1633 = vunpack.c.l.b16 %v1562
        %v1634 = vunpack.c.l.b16 %v1563
        %v1635 = vunpack.c.l.b16 %v1564
        %v1636 = vunpack.c.l.b16 %v1565
        %v1637 = vunpack.c.l.b16 %v1566
        %v1638 = vunpack.c.l.b16 %v1567
        %v1639 = vunpack.c.l.b16 %v1568
        %v1640 = vunpack.c.l.b16 %v1569
        %v1641 = vunpack.c.l.b16 %v1570
        %v1642 = vunpack.c.l.b16 %v1571
        %v1643 = vunpack.c.l.b16 %v1572
        %v1644 = vunpack.c.l.b16 %v1573
        %v1645 = vunpack.c.l.b16 %v1574
        %v1646 = vunpack.c.l.b16 %v1575
        %v1647 = vunpack.c.l.b16 %v1576
        %v1648 = vunpack.c.l.b16 %v1577
        %v1649 = vunpack.c.l.b16 %v1578
        %v1650 = vunpack.c.l.b16 %v1579
        %v1651 = vunpack.c.l.b16 %v1580
        %v1652 = vunpack.c.l.b16 %v1581
        %v1653 = vunpack.c.l.b16 %v1582
        %v1654 = vunpack.c.l.b16 %v1583
        %v1655 = vunpack.c.l.b16 %v1584
        %v1656 = vunpack.c.l.b16 %v1585
        %v1657 = vunpack.c.l.b16 %v1586
        %v1658 = vunpack.c.l.b16 %v1587
        %v1659 = vunpack.c.l.b16 %v1588
        %v1660 = vunpack.c.l.b16 %v1589
        %v1661 = vunpack.c.l.b16 %v1590
        %v1662 = vunpack.c.l.b16 %v1591
        %v1663 = vunpack.c.l.b16 %v1592
        %v1664 = vpack.c.b16 %v1633, %v1632
        %v1665 = vpack.c.b16 %v1635, %v1634
        %v1666 = vpack.c.b16 %v1637, %v1636
        %v1667 = vpack.c.b16 %v1639, %v1638
        %v1668 = vpack.c.b16 %v1641, %v1640
        %v1669 = vpack.c.b16 %v1643, %v1642
        %v1670 = vpack.c.b16 %v1645, %v1644
        %v1671 = vpack.c.b16 %v1647, %v1646
        %v1672 = vpack.c.b16 %v1649, %v1648
        %v1673 = vpack.c.b16 %v1651, %v1650
        %v1674 = vpack.c.b16 %v1653, %v1652
        %v1675 = vpack.c.b16 %v1655, %v1654
        %v1676 = vpack.c.b16 %v1657, %v1656
        %v1677 = vpack.c.b16 %v1659, %v1658
        %v1678 = vpack.c.b16 %v1661, %v1660
        %v1679 = vpack.c.b16 %v1663, %v1662
        %1696 = vmatprep.subr.bf16.mxu0 0
        %1697 = vmatpush1.bf16.msra.mxu0 %v1664
        %1698 = vmatprep.subr.bf16.mxu0 0
        %1699 = vmatpush1.bf16.msra.mxu0 %v1665
        %1700 = vmatprep.subr.bf16.mxu0 0
        %1701 = vmatpush1.bf16.msra.mxu0 %v1666
        %1702 = vmatprep.subr.bf16.mxu0 0
        %1703 = vmatpush1.bf16.msra.mxu0 %v1667
        %1704 = vmatprep.subr.bf16.mxu0 0
        %1705 = vmatpush1.bf16.msra.mxu0 %v1668
        %1706 = vmatprep.subr.bf16.mxu0 0
        %1707 = vmatpush1.bf16.msra.mxu0 %v1669
        %1708 = vmatprep.subr.bf16.mxu0 0
        %1709 = vmatpush1.bf16.msra.mxu0 %v1670
        %1710 = vmatprep.subr.bf16.mxu0 0
        %1711 = vmatpush1.bf16.msra.mxu0 %v1671
        %1712 = vmatprep.subr.bf16.mxu0 0
        %1713 = vmatpush1.bf16.msra.mxu0 %v1672
        %1714 = vmatprep.subr.bf16.mxu0 0
        %1715 = vmatpush1.bf16.msra.mxu0 %v1673
        %1716 = vmatprep.subr.bf16.mxu0 0
        %1717 = vmatpush1.bf16.msra.mxu0 %v1674
        %1718 = vmatprep.subr.bf16.mxu0 0
        %1719 = vmatpush1.bf16.msra.mxu0 %v1675
        %1720 = vmatprep.subr.bf16.mxu0 0
        %1721 = vmatpush1.bf16.msra.mxu0 %v1676
        %1722 = vmatprep.subr.bf16.mxu0 0
        %1723 = vmatpush1.bf16.msra.mxu0 %v1677
        %1724 = vmatprep.subr.bf16.mxu0 0
        %1725 = vmatpush1.bf16.msra.mxu0 %v1678
        %1726 = vmatprep.subr.bf16.mxu0 0
        %1727 = vmatpush1.bf16.msra.mxu0 %v1679
        %1728 = vmatprep.mubr.bf16.mxu0 %v1546
        %1729 = vmatmul.mubr.bf16.gmra.mrb[0].mxu0 %v1545
        %v1730 = vpop.f32.mrb[0].mxu0
        %v1731 = vadd.f32 %v1598, %v1730
        %v1732 = vpop.f32.mrb[0].mxu0
        %v1733 = vpop.f32.mrb[0].mxu0
        %v1734 = vadd.f32 %v1598, %v1733
        %v1735 = vpop.f32.mrb[0].mxu0
        %1736 = vmatprep.mubr.bf16.mxu0 %v1548
        %1737 = vmatmul.mubr.bf16.gmra.mrb[0].mxu0 %v1547
        %v1738 = vpop.f32.mrb[0].mxu0
        %v1739 = vadd.f32 %v1598, %v1738
        %v1740 = vpop.f32.mrb[0].mxu0
        %v1741 = vpop.f32.mrb[0].mxu0
        %v1742 = vadd.f32 %v1598, %v1741
        %v1743 = vpop.f32.mrb[0].mxu0
        %1744 = vmatprep.mubr.bf16.mxu0 %v1550
        %1745 = vmatmul.mubr.bf16.gmra.mrb[0].mxu0 %v1549
        %v1746 = vpop.f32.mrb[0].mxu0
        %v1747 = vadd.f32 %v1598, %v1746
        %v1748 = vpop.f32.mrb[0].mxu0
        %v1749 = vpop.f32.mrb[0].mxu0
        %v1750 = vadd.f32 %v1598, %v1749
        %v1751 = vpop.f32.mrb[0].mxu0
        %1752 = vmatprep.mubr.bf16.mxu0 %v1552
        %1753 = vmatmul.mubr.bf16.gmra.mrb[0].mxu0 %v1551
        %v1754 = vpop.f32.mrb[0].mxu0
        %v1755 = vadd.f32 %v1598, %v1754
        %v1756 = vpop.f32.mrb[0].mxu0
        %v1757 = vpop.f32.mrb[0].mxu0
        %v1758 = vadd.f32 %v1598, %v1757
        %v1759 = vpop.f32.mrb[0].mxu0
        %1760 = vmatprep.mubr.bf16.mxu0 %v1554
        %1761 = vmatmul.mubr.bf16.gmra.mrb[0].mxu0 %v1553
        %v1762 = vpop.f32.mrb[0].mxu0
        %v1763 = vadd.f32 %v1598, %v1762
        %v1764 = vpop.f32.mrb[0].mxu0
        %v1765 = vpop.f32.mrb[0].mxu0
        %v1766 = vadd.f32 %v1598, %v1765
        %v1767 = vpop.f32.mrb[0].mxu0
        %1768 = vmatprep.mubr.bf16.mxu0 %v1556
        %1769 = vmatmul.mubr.bf16.gmra.mrb[0].mxu0 %v1555
        %v1770 = vpop.f32.mrb[0].mxu0
        %v1771 = vadd.f32 %v1598, %v1770
        %v1772 = vpop.f32.mrb[0].mxu0
        %v1773 = vpop.f32.mrb[0].mxu0
        %v1774 = vadd.f32 %v1598, %v1773
        %v1775 = vpop.f32.mrb[0].mxu0
        %1776 = vmatprep.mubr.bf16.mxu0 %v1558
        %1777 = vmatmul.mubr.bf16.gmra.mrb[0].mxu0 %v1557
        %v1778 = vpop.f32.mrb[0].mxu0
        %v1779 = vadd.f32 %v1598, %v1778
        %v1780 = vpop.f32.mrb[0].mxu0
        %v1781 = vpop.f32.mrb[0].mxu0
        %v1782 = vadd.f32 %v1598, %v1781
        %v1783 = vpop.f32.mrb[0].mxu0
        %1784 = vmatprep.mubr.bf16.mxu0 %v1560
        %1785 = vmatmul.mubr.bf16.gmra.mrb[0].mxu0 %v1559
        %v1786 = vpop.f32.mrb[0].mxu0
        %v1787 = vadd.f32 %v1598, %v1786
        %v1788 = vpop.f32.mrb[0].mxu0
        %v1789 = vpop.f32.mrb[0].mxu0
        %v1790 = vadd.f32 %v1598, %v1789
        %v1791 = vpop.f32.mrb[0].mxu0
        %1792 = vdwg.mxu0
        %vm1793 = vcmask 64512
        %v1794 = vsel %vm1793, %v1731, -inf
        %1795 = vmax.xlane.f32.xlu0 %v1794
        %v1796 = vpop.xlane.xlu0 %1795
        %v1797 = vsel %vm1793, %v1734, -inf
        %1798 = vmax.xlane.f32.xlu0 %v1797
        %v1799 = vpop.xlane.xlu0 %1798
        %v1800 = vsel %vm1793, %v1739, -inf
        %1801 = vmax.xlane.f32.xlu0 %v1800
        %v1802 = vpop.xlane.xlu0 %1801
        %v1803 = vsel %vm1793, %v1742, -inf
        %1804 = vmax.xlane.f32.xlu0 %v1803
        %v1805 = vpop.xlane.xlu0 %1804
        %v1806 = vsel %vm1793, %v1747, -inf
        %1807 = vmax.xlane.f32.xlu0 %v1806
        %v1808 = vpop.xlane.xlu0 %1807
        %v1809 = vsel %vm1793, %v1750, -inf
        %1810 = vmax.xlane.f32.xlu0 %v1809
        %v1811 = vpop.xlane.xlu0 %1810
        %v1812 = vsel %vm1793, %v1755, -inf
        %1813 = vmax.xlane.f32.xlu0 %v1812
        %v1814 = vpop.xlane.xlu0 %1813
        %v1815 = vsel %vm1793, %v1758, -inf
        %1816 = vmax.xlane.f32.xlu0 %v1815
        %v1817 = vpop.xlane.xlu0 %1816
        %v1818 = vsel %vm1793, %v1763, -inf
        %1819 = vmax.xlane.f32.xlu0 %v1818
        %v1820 = vpop.xlane.xlu0 %1819
        %v1821 = vsel %vm1793, %v1766, -inf
        %1822 = vmax.xlane.f32.xlu0 %v1821
        %v1823 = vpop.xlane.xlu0 %1822
        %v1824 = vsel %vm1793, %v1771, -inf
        %1825 = vmax.xlane.f32.xlu0 %v1824
        %v1826 = vpop.xlane.xlu0 %1825
        %v1827 = vsel %vm1793, %v1774, -inf
        %1828 = vmax.xlane.f32.xlu0 %v1827
        %v1829 = vpop.xlane.xlu0 %1828
        %v1830 = vsel %vm1793, %v1779, -inf
        %1831 = vmax.xlane.f32.xlu0 %v1830
        %v1832 = vpop.xlane.xlu0 %1831
        %v1833 = vsel %vm1793, %v1782, -inf
        %1834 = vmax.xlane.f32.xlu0 %v1833
        %v1835 = vpop.xlane.xlu0 %1834
        %v1836 = vsel %vm1793, %v1787, -inf
        %1837 = vmax.xlane.f32.xlu0 %v1836
        %v1838 = vpop.xlane.xlu0 %1837
        %v1839 = vsel %vm1793, %v1790, -inf
        %1840 = vmax.xlane.f32.xlu0 %v1839
        %v1841 = vpop.xlane.xlu0 %1840
        %v1842 = vsub.f32 %v1731, %v1796
        %v1843 = vsub.f32 %v1734, %v1799
        %v1844 = vsub.f32 %v1739, %v1802
        %v1845 = vsub.f32 %v1742, %v1805
        %v1846 = vsub.f32 %v1747, %v1808
        %v1847 = vsub.f32 %v1750, %v1811
        %v1848 = vsub.f32 %v1755, %v1814
        %v1849 = vsub.f32 %v1758, %v1817
        %v1850 = vsub.f32 %v1763, %v1820
        %v1851 = vsub.f32 %v1766, %v1823
        %v1852 = vsub.f32 %v1771, %v1826
        %v1853 = vsub.f32 %v1774, %v1829
        %v1854 = vsub.f32 %v1779, %v1832
        %v1855 = vsub.f32 %v1782, %v1835
        %v1856 = vsub.f32 %v1787, %v1838
        %v1857 = vsub.f32 %v1790, %v1841
        %v1858 = vmul.f32 %v1842, 1.442695
        %v1859 = vpow.pop %v1858
        %v1860 = vmul.f32 %v1843, 1.442695
        %v1861 = vpow.pop %v1860
        %v1862 = vmul.f32 %v1844, 1.442695
        %v1863 = vpow.pop %v1862
        %v1864 = vmul.f32 %v1845, 1.442695
        %v1865 = vpow.pop %v1864
        %v1866 = vmul.f32 %v1846, 1.442695
        %v1867 = vpow.pop %v1866
        %v1868 = vmul.f32 %v1847, 1.442695
        %v1869 = vpow.pop %v1868
        %v1870 = vmul.f32 %v1848, 1.442695
        %v1871 = vpow.pop %v1870
        %v1872 = vmul.f32 %v1849, 1.442695
        %v1873 = vpow.pop %v1872
        %v1874 = vmul.f32 %v1850, 1.442695
        %v1875 = vpow.pop %v1874
        %v1876 = vmul.f32 %v1851, 1.442695
        %v1877 = vpow.pop %v1876
        %v1878 = vmul.f32 %v1852, 1.442695
        %v1879 = vpow.pop %v1878
        %v1880 = vmul.f32 %v1853, 1.442695
        %v1881 = vpow.pop %v1880
        %v1882 = vmul.f32 %v1854, 1.442695
        %v1883 = vpow.pop %v1882
        %v1884 = vmul.f32 %v1855, 1.442695
        %v1885 = vpow.pop %v1884
        %v1886 = vmul.f32 %v1856, 1.442695
        %v1887 = vpow.pop %v1886
        %v1888 = vmul.f32 %v1857, 1.442695
        %v1889 = vpow.pop %v1888
        %v1890 = vsel %vm1793, %v1859, 0.0
        %1891 = vadd.xlane.f32.xlu0 %v1890
        %v1892 = vpop.xlane.xlu0 %1891
        %v1893 = vsel %vm1793, %v1861, 0.0
        %1894 = vadd.xlane.f32.xlu0 %v1893
        %v1895 = vpop.xlane.xlu0 %1894
        %v1896 = vsel %vm1793, %v1863, 0.0
        %1897 = vadd.xlane.f32.xlu0 %v1896
        %v1898 = vpop.xlane.xlu0 %1897
        %v1899 = vsel %vm1793, %v1865, 0.0
        %1900 = vadd.xlane.f32.xlu0 %v1899
        %v1901 = vpop.xlane.xlu0 %1900
        %v1902 = vsel %vm1793, %v1867, 0.0
        %1903 = vadd.xlane.f32.xlu0 %v1902
        %v1904 = vpop.xlane.xlu0 %1903
        %v1905 = vsel %vm1793, %v1869, 0.0
        %1906 = vadd.xlane.f32.xlu0 %v1905
        %v1907 = vpop.xlane.xlu0 %1906
        %v1908 = vsel %vm1793, %v1871, 0.0
        %1909 = vadd.xlane.f32.xlu0 %v1908
        %v1910 = vpop.xlane.xlu0 %1909
        %v1911 = vsel %vm1793, %v1873, 0.0
        %1912 = vadd.xlane.f32.xlu0 %v1911
        %v1913 = vpop.xlane.xlu0 %1912
        %v1914 = vsel %vm1793, %v1875, 0.0
        %1915 = vadd.xlane.f32.xlu0 %v1914
        %v1916 = vpop.xlane.xlu0 %1915
        %v1917 = vsel %vm1793, %v1877, 0.0
        %1918 = vadd.xlane.f32.xlu0 %v1917
        %v1919 = vpop.xlane.xlu0 %1918
        %v1920 = vsel %vm1793, %v1879, 0.0
        %1921 = vadd.xlane.f32.xlu0 %v1920
        %v1922 = vpop.xlane.xlu0 %1921
        %v1923 = vsel %vm1793, %v1881, 0.0
        %1924 = vadd.xlane.f32.xlu0 %v1923
        %v1925 = vpop.xlane.xlu0 %1924
        %v1926 = vsel %vm1793, %v1883, 0.0
        %1927 = vadd.xlane.f32.xlu0 %v1926
        %v1928 = vpop.xlane.xlu0 %1927
        %v1929 = vsel %vm1793, %v1885, 0.0
        %1930 = vadd.xlane.f32.xlu0 %v1929
        %v1931 = vpop.xlane.xlu0 %1930
        %v1932 = vsel %vm1793, %v1887, 0.0
        %1933 = vadd.xlane.f32.xlu0 %v1932
        %v1934 = vpop.xlane.xlu0 %1933
        %v1935 = vsel %vm1793, %v1889, 0.0
        %1936 = vadd.xlane.f32.xlu0 %v1935
        %v1937 = vpop.xlane.xlu0 %1936
        %v1938 = vrcp.pop %v1892
        %v1939 = vmul.f32 %v1859, %v1938
        %v1940 = vrcp.pop %v1895
        %v1941 = vmul.f32 %v1861, %v1940
        %v1942 = vrcp.pop %v1898
        %v1943 = vmul.f32 %v1863, %v1942
        %v1944 = vrcp.pop %v1901
        %v1945 = vmul.f32 %v1865, %v1944
        %v1946 = vrcp.pop %v1904
        %v1947 = vmul.f32 %v1867, %v1946
        %v1948 = vrcp.pop %v1907
        %v1949 = vmul.f32 %v1869, %v1948
        %v1950 = vrcp.pop %v1910
        %v1951 = vmul.f32 %v1871, %v1950
        %v1952 = vrcp.pop %v1913
        %v1953 = vmul.f32 %v1873, %v1952
        %v1954 = vrcp.pop %v1916
        %v1955 = vmul.f32 %v1875, %v1954
        %v1956 = vrcp.pop %v1919
        %v1957 = vmul.f32 %v1877, %v1956
        %v1958 = vrcp.pop %v1922
        %v1959 = vmul.f32 %v1879, %v1958
        %v1960 = vrcp.pop %v1925
        %v1961 = vmul.f32 %v1881, %v1960
        %v1962 = vrcp.pop %v1928
        %v1963 = vmul.f32 %v1883, %v1962
        %v1964 = vrcp.pop %v1931
        %v1965 = vmul.f32 %v1885, %v1964
        %v1966 = vrcp.pop %v1934
        %v1967 = vmul.f32 %v1887, %v1966
        %v1968 = vrcp.pop %v1937
        %v1969 = vmul.f32 %v1889, %v1968
        %1970 = vst.msk [vmem:[%s328] sm:$0xff] %vm1793, %v1939
        %1971 = vst.msk [vmem:[%s328 + $0x8] sm:$0xff] %vm1793, %v1941
        %1972 = vst.msk [vmem:[%s328 + $0x10] sm:$0xff] %vm1793, %v1943
        %1973 = vst.msk [vmem:[%s328 + $0x18] sm:$0xff] %vm1793, %v1945
        %1974 = vst.msk [vmem:[%s328 + $0x20] sm:$0xff] %vm1793, %v1947
        %1975 = vst.msk [vmem:[%s328 + $0x28] sm:$0xff] %vm1793, %v1949
        %1976 = vst.msk [vmem:[%s328 + $0x30] sm:$0xff] %vm1793, %v1951
        %1977 = vst.msk [vmem:[%s328 + $0x38] sm:$0xff] %vm1793, %v1953
        %1978 = vst.msk [vmem:[%s328 + $0x40] sm:$0xff] %vm1793, %v1955
        %1979 = vst.msk [vmem:[%s328 + $0x48] sm:$0xff] %vm1793, %v1957
        %1980 = vst.msk [vmem:[%s328 + $0x50] sm:$0xff] %vm1793, %v1959
        %1981 = vst.msk [vmem:[%s328 + $0x58] sm:$0xff] %vm1793, %v1961
        %1982 = vst.msk [vmem:[%s328 + $0x60] sm:$0xff] %vm1793, %v1963
        %1983 = vst.msk [vmem:[%s328 + $0x68] sm:$0xff] %vm1793, %v1965
        %1984 = vst.msk [vmem:[%s328 + $0x70] sm:$0xff] %vm1793, %v1967
        %1985 = vst.msk [vmem:[%s328 + $0x78] sm:$0xff] %vm1793, %v1969
        %s1986 = smul.u32 16, %s22
        %p1987 = scmp.lt.s32.totalorder %s1986, 31
        %s1988 = scalar_select %p1987, %s1986, 31
        %s1989 = smul.addr %s1988, 8
        %s1990 = scalar_lea.vmem %s7, %s1989
        // Predicated region
        $region61: #{tpu_custom_call.1} parent=47 // pred_check
          %p1991 = pneg %p192
        $region62: #{tpu_custom_call.1} parent=47 // pred_check_branch
          %1993 = sbr.rel (%p1991) target = $region64
        $region63: #{tpu_custom_call.1} parent=47 // pred_region
          %s1994 = smul.u32 16, %s22
        $region64: #{tpu_custom_call.1} parent=47 // pred_fallthru
          _
      $region48: #{tpu_custom_call.1} parent=5 // pred_fallthru
        _
      %p1995 = scmp.le.s32.totalorder 2, %s17
      // Predicated region
      $region65: #{tpu_custom_call.1} parent=5 // pred_check
        %p1996 = pneg %p1995
      $region66: #{tpu_custom_call.1} parent=5 // pred_check_branch
        %1998 = sbr.rel (%p1996) target = $region68
      $region67: #{tpu_custom_call.1} parent=5 // pred_region
        %s1999 = ssub.s32 %s17, 2
        // Predicated region
        $region69: #{tpu_custom_call.1} parent=67 // pred_check
          %p2000 = pneg %p198
        $region70: #{tpu_custom_call.1} parent=67 // pred_check_branch
          %2002 = sbr.rel (%p2000) target = $region72
        $region71: #{tpu_custom_call.1} parent=67 // pred_region
          %s2003 = smul.u32 16, %s23
          %p2004 = scmp.lt.s32.totalorder %s2003, 31
          %s2005 = scalar_select %p2004, %s2003, 31
          %s2006 = smul.addr %s2005, 8
          %s2007 = scalar_lea.vmem %s7, %s2006
        $region72: #{tpu_custom_call.1} parent=67 // pred_fallthru
          _
      $region68: #{tpu_custom_call.1} parent=5 // pred_fallthru
        _
    $region6: #{tpu_custom_call.1} parent=1 // loop_footer
      %s21 = sadd.s32 1, %s17
    $region7: #{tpu_custom_call.1} parent=1 // loop_footer_branch
      %16 = sbr.rel target = $region3
    $region8: #{tpu_custom_call.1} parent=1 // loop_exit
      _
    %2008 = vsyncpa [#allocation3], 1
    %s2009 = scalar_lea.sflag [#allocation3], 1
    %2010 = vsyncpa %s2009, 1
    %2011 = vsyncpa [#allocation5], 1

</llo_original>
